<compile_context>
chip_gen: v6e
topology: v6e:2x2x1
jax: 0.10.0
libtpu: 0.0.40
codegen_flags: <defaults>
</compile_context>

<pallas_src>
import math

import jax
import jax.numpy as jnp
from jax.experimental import pallas as pl
from jax.experimental.pallas import tpu as pltpu  # noqa: F401  (TPU backend)


# ----------------------------- config (small, consistent with the module) ---
class SmallConfig:
    n_latents = [8, 4, 2]        # layer idx=0: 8 latents in -> 4 latents out
    hidden_size = [32, 64, 16]   # hidden_in=32, hidden_out=64
    n_heads = [4, 4]
    hidden_act = "silu"
    dropout = 0.5                # eval-mode: identity
    attention_bias = False
    mlp_bias = False
    rope_theta = 10000.0


IDX = 0
CFG = SmallConfig()
L_IN = CFG.n_latents[IDX]
L_OUT = CFG.n_latents[IDX + 1]
D_IN = CFG.hidden_size[IDX]
D_OUT = CFG.hidden_size[IDX + 1]
D_INTER = L_IN * D_IN // L_OUT
RATIO = L_IN // L_OUT            # how many input latents fold into one output row
N_HEADS = CFG.n_heads[IDX]
HEAD = D_IN // N_HEADS
MAX_LAT = max(CFG.n_latents)
LN_EPS = 1e-5

assert D_INTER == RATIO * D_IN


# ----------------------------- rotary tables (glue, plain JAX) --------------
def get_cos_sin(dim, max_positions, base=10000.0, dtype=jnp.float32):
    inv_freq = 1.0 / (base ** (jnp.arange(0, dim, 2, dtype=jnp.float32) / dim))
    t = jnp.arange(max_positions, dtype=jnp.float32)
    freqs = jnp.einsum("i,j->ij", t, inv_freq)
    emb = jnp.concatenate([freqs, freqs], axis=-1)
    return jnp.cos(emb).astype(dtype), jnp.sin(emb).astype(dtype)


def rotate_half(x):
    d = x.shape[-1]
    x1 = x[..., : d // 2]
    x2 = x[..., d // 2:]
    return jnp.concatenate([-x2, x1], axis=-1)


# ----------------------------- fused kernel ---------------------------------
def fused_kernel(x_ref, cos_ref, sin_ref, bias_ref, ln1w_ref, ln1b_ref,
                 wqkv_ref, wo_ref, ln2w_ref, ln2b_ref, wres_ref, wug_ref,
                 wdown_ref, out_ref):
    bl_out = x_ref.shape[0]                       # B * L_OUT
    y_in = x_ref[...]                             # (B*L_OUT, D_INTER)

    # chunk-major stack: row c*bl_out + (b*L_OUT + j) holds latent (b, j*RATIO+c)
    x_all = jnp.concatenate(
        [y_in[:, c * D_IN:(c + 1) * D_IN] for c in range(RATIO)], axis=0)

    # ---- ln1 (per latent, D_IN wide) ----------------------------------------
    m1 = jnp.mean(x_all, axis=-1, keepdims=True)
    v1 = jnp.mean((x_all - m1) ** 2, axis=-1, keepdims=True)
    xn = (x_all - m1) * jax.lax.rsqrt(v1 + LN_EPS)
    xn = xn * ln1w_ref[...] + ln1b_ref[...]

    # ---- fused QKV (+ pre-rotated Q/K) matmul, elementwise RoPE -------------
    qkv = jnp.dot(xn, wqkv_ref[...], preferred_element_type=jnp.float32)
    cos = cos_ref[...]
    sin = sin_ref[...]
    q = qkv[:, 0 * D_IN:1 * D_IN] * cos + qkv[:, 1 * D_IN:2 * D_IN] * sin
    k = qkv[:, 2 * D_IN:3 * D_IN] * cos + qkv[:, 3 * D_IN:4 * D_IN] * sin
    v = qkv[:, 4 * D_IN:5 * D_IN]

    # ---- attention over all rows at once; cross-batch entries masked --------
    bias = bias_ref[...]                          # (N, N) additive 0 / -1e30
    head_outs = []
    for h in range(N_HEADS):
        sl = slice(h * HEAD, (h + 1) * HEAD)
        qh, kh, vh = q[:, sl], k[:, sl], v[:, sl]
        s = jax.lax.dot_general(qh, kh, (((1,), (1,)), ((), ())),
                                preferred_element_type=jnp.float32) + bias
        s = s - jnp.max(s, axis=-1, keepdims=True)
        p = jnp.exp(s)
        p = p * pl.reciprocal(jnp.sum(p, axis=-1, keepdims=True), approx=True)
        head_outs.append(jnp.dot(p, vh, preferred_element_type=jnp.float32))
    attn = jnp.concatenate(head_outs, axis=-1)    # (N, D_IN)
    x_res = xn + jnp.dot(attn, wo_ref[...], preferred_element_type=jnp.float32)

    # ---- view(B, L_OUT, D_INTER): chunk-major stack -> lane concat ----------
    y = jnp.concatenate(
        [x_res[c * bl_out:(c + 1) * bl_out, :] for c in range(RATIO)], axis=-1)

    # ---- ln2 + residual projection + SwiGLU MLP -----------------------------
    m2 = jnp.mean(y, axis=-1, keepdims=True)
    v2 = jnp.mean((y - m2) ** 2, axis=-1, keepdims=True)
    yn = (y - m2) * jax.lax.rsqrt(v2 + LN_EPS)
    yn = yn * ln2w_ref[...] + ln2b_ref[...]

    res = jnp.dot(y, wres_ref[...], preferred_element_type=jnp.float32)
    ug = jnp.dot(yn, wug_ref[...], preferred_element_type=jnp.float32)
    up = ug[:, : 4 * D_INTER]
    gate = ug[:, 4 * D_INTER:]
    hidden = up * (gate * jax.nn.sigmoid(gate))   # silu gate
    out_ref[...] = res + jnp.dot(hidden, wdown_ref[...],
                                 preferred_element_type=jnp.float32)


# ----------------------------- wrapper ---------------------------------------
def _neural_encoder_layer(latents, params):
    B, L, D = latents.shape
    assert (L, D) == (L_IN, D_IN)
    bl_out = B * L_OUT
    n_rows = B * L_IN

    # rotary tables, gathered at the latent timestamps, in the chunk-major row
    # order used inside the kernel, and tiled across heads to full D_IN width.
    ts = (jnp.arange(L_IN, dtype=jnp.float32) * (MAX_LAT - 1) / (L_IN - 1)).astype(jnp.int32)
    cos_tab, sin_tab = get_cos_sin(HEAD, MAX_LAT, base=CFG.rope_theta)
    pos_perm = jnp.concatenate([jnp.tile(ts[c::RATIO], (B,)) for c in range(RATIO)])
    cos_perm = jnp.tile(cos_tab[pos_perm], (1, N_HEADS))    # (n_rows, D_IN)
    sin_perm = jnp.tile(sin_tab[pos_perm], (1, N_HEADS))

    # additive attention bias masking out cross-batch pairs
    row_batch = (jnp.arange(n_rows) % bl_out) // L_OUT
    bias = jnp.where(row_batch[:, None] == row_batch[None, :], 0.0, -1e30)
    bias = bias.astype(jnp.float32)

    # fold rotate_half into a block-diagonal signed permutation; fold the
    # 1/sqrt(head) score scale into Wq; fuse [Wq, Wq@R, Wk, Wk@R, Wv].
    half = HEAD // 2
    rot_h = jnp.block(
        [[jnp.zeros((half, half), jnp.float32), jnp.eye(half, dtype=jnp.float32)],
         [-jnp.eye(half, dtype=jnp.float32), jnp.zeros((half, half), jnp.float32)]])
    rot = jnp.kron(jnp.eye(N_HEADS, dtype=jnp.float32), rot_h)     # (D_IN, D_IN)
    scale = 1.0 / math.sqrt(HEAD)
    wq_s = params["wq"] * scale
    wqkv = jnp.concatenate(
        [wq_s, wq_s @ rot, params["wk"], params["wk"] @ rot, params["wv"]], axis=1)
    wupgate = jnp.concatenate([params["wup"], params["wgate"]], axis=1)

    # free XLA reinterpretation: (B, L_IN, D_IN) -> (B*L_OUT, D_INTER)
    x2d = latents.reshape(bl_out, D_INTER)

    out2d = pl.pallas_call(
        fused_kernel,
        out_shape=jax.ShapeDtypeStruct((bl_out, D_OUT), jnp.float32),
    )(x2d, cos_perm, sin_perm, bias,
      params["ln1_w"], params["ln1_b"], wqkv, params["wo"],
      params["ln2_w"], params["ln2_b"], params["wres"], wupgate, params["wdown"])

    return out2d.reshape(B, L_OUT, D_OUT)


neural_encoder_layer = jax.jit(_neural_encoder_layer)


# ----------------------------- pure-JAX reference ----------------------------
def reference_forward(latents, params):
    def ln(x, w, b):
        m = x.mean(-1, keepdims=True)
        v = ((x - m) ** 2).mean(-1, keepdims=True)
        return (x - m) / jnp.sqrt(v + LN_EPS) * w + b

    B = latents.shape[0]
    x = ln(latents, params["ln1_w"][0], params["ln1_b"][0])
    q = x @ params["wq"]
    k = x @ params["wk"]
    v = x @ params["wv"]
    to_heads = lambda t: t.reshape(B, L_IN, N_HEADS, HEAD).transpose(0, 2, 1, 3)
    qh, kh, vh = map(to_heads, (q, k, v))

    ts = (jnp.arange(L_IN, dtype=jnp.float32) * (MAX_LAT - 1) / (L_IN - 1)).astype(jnp.int32)
    cos_tab, sin_tab = get_cos_sin(HEAD, MAX_LAT, base=CFG.rope_theta)
    cos = cos_tab[ts][None, None]
    sin = sin_tab[ts][None, None]
    qh = qh * cos + rotate_half(qh) * sin
    kh = kh * cos + rotate_half(kh) * sin

    s = jnp.einsum("bhld,bhtd->bhlt", qh, kh) / math.sqrt(HEAD)
    p = jax.nn.softmax(s, axis=-1)
    o = jnp.einsum("bhlt,bhtd->bhld", p, vh).transpose(0, 2, 1, 3).reshape(B, L_IN, D_IN)
    attn = o @ params["wo"]
    y = (x + attn).reshape(B, L_OUT, D_INTER)
    yn = ln(y, params["ln2_w"][0], params["ln2_b"][0])
    mlp = ((yn @ params["wup"]) * jax.nn.silu(yn @ params["wgate"])) @ params["wdown"]
    return y @ params["wres"] + mlp


# ----------------------------- main ------------------------------------------
if __name__ == "__main__":
    key = jax.random.PRNGKey(0)
    keys = jax.random.split(key, 10)

    # weights stored pre-transposed as (in, out) so kernels compute x @ W.
    params = {
        "ln1_w": jnp.ones((1, D_IN), jnp.float32),
        "ln1_b": jnp.zeros((1, D_IN), jnp.float32),
        "wq": 0.05 * jax.random.normal(keys[0], (D_IN, D_IN), jnp.float32),
        "wk": 0.05 * jax.random.normal(keys[1], (D_IN, D_IN), jnp.float32),
        "wv": 0.05 * jax.random.normal(keys[2], (D_IN, D_IN), jnp.float32),
        "wo": 0.05 * jax.random.normal(keys[3], (D_IN, D_IN), jnp.float32),
        "ln2_w": jnp.ones((1, D_INTER), jnp.float32),
        "ln2_b": jnp.zeros((1, D_INTER), jnp.float32),
        "wres": 0.05 * jax.random.normal(keys[4], (D_INTER, D_OUT), jnp.float32),
        "wup": 0.05 * jax.random.normal(keys[5], (D_INTER, 4 * D_INTER), jnp.float32),
        "wgate": 0.05 * jax.random.normal(keys[6], (D_INTER, 4 * D_INTER), jnp.float32),
        "wdown": 0.05 * jax.random.normal(keys[7], (4 * D_INTER, D_OUT), jnp.float32),
    }

    latents = jax.random.normal(keys[8], (2, L_IN, D_IN), jnp.float32)

    out = neural_encoder_layer(latents, params)
    out = jax.block_until_ready(out)

    ref = jax.block_until_ready(reference_forward(latents, params))
    assert out.shape == (2, L_OUT, D_OUT), out.shape
    err = float(jnp.max(jnp.abs(out - ref)))
    assert jnp.allclose(out, ref, atol=2e-2, rtol=2e-2), err

    print("KERNEL_OK")
</pallas_src>

<mosaic_0001>
module attributes {stable_mosaic.version = 11 : i64} {
  func.func @fused_kernel(%arg0: memref<8x64xf32, #tpu.memory_space<vmem>>, %arg1: memref<16x32xf32, #tpu.memory_space<vmem>>, %arg2: memref<16x32xf32, #tpu.memory_space<vmem>>, %arg3: memref<16x16xf32, #tpu.memory_space<vmem>>, %arg4: memref<1x32xf32, #tpu.memory_space<vmem>>, %arg5: memref<1x32xf32, #tpu.memory_space<vmem>>, %arg6: memref<32x160xf32, #tpu.memory_space<vmem>>, %arg7: memref<32x32xf32, #tpu.memory_space<vmem>>, %arg8: memref<1x64xf32, #tpu.memory_space<vmem>>, %arg9: memref<1x64xf32, #tpu.memory_space<vmem>>, %arg10: memref<64x64xf32, #tpu.memory_space<vmem>>, %arg11: memref<64x512xf32, #tpu.memory_space<vmem>>, %arg12: memref<256x64xf32, #tpu.memory_space<vmem>>, %arg13: memref<8x64xf32, #tpu.memory_space<vmem>>) attributes {dimension_semantics = [], scalar_prefetch = 0 : i64, scratch_operands = 0 : i64, tpu.core_type = #tpu.core_type<tc>} {
    %c0 = arith.constant 0 : index
    %c0_0 = arith.constant 0 : index
    %0 = vector.load %arg0[%c0, %c0_0] : memref<8x64xf32, #tpu.memory_space<vmem>>, vector<8x64xf32>
    %1 = vector.extract_strided_slice %0 {offsets = [0, 0], sizes = [8, 32], strides = [1, 1]} : vector<8x64xf32> to vector<8x32xf32>
    %2 = vector.extract_strided_slice %0 {offsets = [0, 32], sizes = [8, 32], strides = [1, 1]} : vector<8x64xf32> to vector<8x32xf32>
    %3 = tpu.concatenate %1, %2 in 0 : vector<8x32xf32>, vector<8x32xf32> -> vector<16x32xf32>
    %cst = arith.constant dense<0.000000e+00> : vector<16xf32>
    %4 = vector.multi_reduction <add>, %3, %cst [1] : vector<16x32xf32> to vector<16xf32>
    %5 = vector.shape_cast %4 : vector<16xf32> to vector<16x1xf32>
    %cst_1 = arith.constant 3.200000e+01 : f32
    %6 = vector.broadcast %cst_1 : f32 to vector<16x1xf32>
    %7 = arith.divf %5, %6 : vector<16x1xf32>
    %8 = vector.broadcast %7 : vector<16x1xf32> to vector<16x32xf32>
    %9 = arith.subf %3, %8 : vector<16x32xf32>
    %10 = arith.mulf %9, %9 : vector<16x32xf32>
    %cst_2 = arith.constant dense<0.000000e+00> : vector<16xf32>
    %11 = vector.multi_reduction <add>, %10, %cst_2 [1] : vector<16x32xf32> to vector<16xf32>
    %12 = vector.shape_cast %11 : vector<16xf32> to vector<16x1xf32>
    %cst_3 = arith.constant 3.200000e+01 : f32
    %13 = vector.broadcast %cst_3 : f32 to vector<16x1xf32>
    %14 = arith.divf %12, %13 : vector<16x1xf32>
    %15 = vector.broadcast %7 : vector<16x1xf32> to vector<16x32xf32>
    %16 = arith.subf %3, %15 : vector<16x32xf32>
    %cst_4 = arith.constant 9.99999974E-6 : f32
    %17 = vector.broadcast %cst_4 : f32 to vector<16x1xf32>
    %18 = arith.addf %14, %17 : vector<16x1xf32>
    %19 = math.rsqrt %18 : vector<16x1xf32>
    %20 = vector.broadcast %19 : vector<16x1xf32> to vector<16x32xf32>
    %21 = arith.mulf %16, %20 : vector<16x32xf32>
    %c0_5 = arith.constant 0 : index
    %c0_6 = arith.constant 0 : index
    %22 = vector.load %arg4[%c0_5, %c0_6] : memref<1x32xf32, #tpu.memory_space<vmem>>, vector<1x32xf32>
    %23 = vector.broadcast %22 : vector<1x32xf32> to vector<16x32xf32>
    %24 = arith.mulf %21, %23 : vector<16x32xf32>
    %c0_7 = arith.constant 0 : index
    %c0_8 = arith.constant 0 : index
    %25 = vector.load %arg5[%c0_7, %c0_8] : memref<1x32xf32, #tpu.memory_space<vmem>>, vector<1x32xf32>
    %26 = vector.broadcast %25 : vector<1x32xf32> to vector<16x32xf32>
    %27 = arith.addf %24, %26 : vector<16x32xf32>
    %c0_9 = arith.constant 0 : index
    %c0_10 = arith.constant 0 : index
    %28 = vector.load %arg6[%c0_9, %c0_10] : memref<32x160xf32, #tpu.memory_space<vmem>>, vector<32x160xf32>
    %cst_11 = arith.constant dense<0.000000e+00> : vector<16x160xf32>
    %29 = tpu.matmul %27, %28, %cst_11 {dimension_numbers = #tpu.dot_dimension_numbers<[1], [0], [0], [1], [0, 0, 1, 1], [], []>} : vector<16x32xf32>, vector<32x160xf32>, vector<16x160xf32> -> vector<16x160xf32>
    %c0_12 = arith.constant 0 : index
    %c0_13 = arith.constant 0 : index
    %30 = vector.load %arg1[%c0_12, %c0_13] : memref<16x32xf32, #tpu.memory_space<vmem>>, vector<16x32xf32>
    %c0_14 = arith.constant 0 : index
    %c0_15 = arith.constant 0 : index
    %31 = vector.load %arg2[%c0_14, %c0_15] : memref<16x32xf32, #tpu.memory_space<vmem>>, vector<16x32xf32>
    %32 = vector.extract_strided_slice %29 {offsets = [0, 0], sizes = [16, 32], strides = [1, 1]} : vector<16x160xf32> to vector<16x32xf32>
    %33 = arith.mulf %32, %30 : vector<16x32xf32>
    %34 = vector.extract_strided_slice %29 {offsets = [0, 32], sizes = [16, 32], strides = [1, 1]} : vector<16x160xf32> to vector<16x32xf32>
    %35 = arith.mulf %34, %31 : vector<16x32xf32>
    %36 = arith.addf %33, %35 : vector<16x32xf32>
    %37 = vector.extract_strided_slice %29 {offsets = [0, 64], sizes = [16, 32], strides = [1, 1]} : vector<16x160xf32> to vector<16x32xf32>
    %38 = arith.mulf %37, %30 : vector<16x32xf32>
    %39 = vector.extract_strided_slice %29 {offsets = [0, 96], sizes = [16, 32], strides = [1, 1]} : vector<16x160xf32> to vector<16x32xf32>
    %40 = arith.mulf %39, %31 : vector<16x32xf32>
    %41 = arith.addf %38, %40 : vector<16x32xf32>
    %42 = vector.extract_strided_slice %29 {offsets = [0, 128], sizes = [16, 32], strides = [1, 1]} : vector<16x160xf32> to vector<16x32xf32>
    %c0_16 = arith.constant 0 : index
    %c0_17 = arith.constant 0 : index
    %43 = vector.load %arg3[%c0_16, %c0_17] : memref<16x16xf32, #tpu.memory_space<vmem>>, vector<16x16xf32>
    %44 = vector.extract_strided_slice %36 {offsets = [0, 0], sizes = [16, 8], strides = [1, 1]} : vector<16x32xf32> to vector<16x8xf32>
    %45 = vector.extract_strided_slice %41 {offsets = [0, 0], sizes = [16, 8], strides = [1, 1]} : vector<16x32xf32> to vector<16x8xf32>
    %46 = vector.extract_strided_slice %42 {offsets = [0, 0], sizes = [16, 8], strides = [1, 1]} : vector<16x32xf32> to vector<16x8xf32>
    %cst_18 = arith.constant dense<0.000000e+00> : vector<16x16xf32>
    %47 = tpu.matmul %44, %45, %cst_18 {dimension_numbers = #tpu.dot_dimension_numbers<[1], [1], [0], [0], [0, 0, 1, 0], [], []>} : vector<16x8xf32>, vector<16x8xf32>, vector<16x16xf32> -> vector<16x16xf32>
    %48 = arith.addf %47, %43 : vector<16x16xf32>
    %cst_19 = arith.constant dense<0xFF800000> : vector<16xf32>
    %49 = vector.multi_reduction <maximumf>, %48, %cst_19 [1] : vector<16x16xf32> to vector<16xf32>
    %50 = vector.shape_cast %49 : vector<16xf32> to vector<16x1xf32>
    %51 = vector.broadcast %50 : vector<16x1xf32> to vector<16x16xf32>
    %52 = arith.subf %48, %51 : vector<16x16xf32>
    %53 = math.exp %52 : vector<16x16xf32>
    %cst_20 = arith.constant dense<0.000000e+00> : vector<16xf32>
    %54 = vector.multi_reduction <add>, %53, %cst_20 [1] : vector<16x16xf32> to vector<16xf32>
    %55 = vector.shape_cast %54 : vector<16xf32> to vector<16x1xf32>
    %56 = tpu.reciprocal %55 {approx = true} : vector<16x1xf32> -> vector<16x1xf32>
    %57 = vector.broadcast %56 : vector<16x1xf32> to vector<16x16xf32>
    %58 = arith.mulf %53, %57 : vector<16x16xf32>
    %cst_21 = arith.constant dense<0.000000e+00> : vector<16x8xf32>
    %59 = tpu.matmul %58, %46, %cst_21 {dimension_numbers = #tpu.dot_dimension_numbers<[1], [0], [0], [1], [0, 0, 1, 1], [], []>} : vector<16x16xf32>, vector<16x8xf32>, vector<16x8xf32> -> vector<16x8xf32>
    %60 = vector.extract_strided_slice %36 {offsets = [0, 8], sizes = [16, 8], strides = [1, 1]} : vector<16x32xf32> to vector<16x8xf32>
    %61 = vector.extract_strided_slice %41 {offsets = [0, 8], sizes = [16, 8], strides = [1, 1]} : vector<16x32xf32> to vector<16x8xf32>
    %62 = vector.extract_strided_slice %42 {offsets = [0, 8], sizes = [16, 8], strides = [1, 1]} : vector<16x32xf32> to vector<16x8xf32>
    %cst_22 = arith.constant dense<0.000000e+00> : vector<16x16xf32>
    %63 = tpu.matmul %60, %61, %cst_22 {dimension_numbers = #tpu.dot_dimension_numbers<[1], [1], [0], [0], [0, 0, 1, 0], [], []>} : vector<16x8xf32>, vector<16x8xf32>, vector<16x16xf32> -> vector<16x16xf32>
    %64 = arith.addf %63, %43 : vector<16x16xf32>
    %cst_23 = arith.constant dense<0xFF800000> : vector<16xf32>
    %65 = vector.multi_reduction <maximumf>, %64, %cst_23 [1] : vector<16x16xf32> to vector<16xf32>
    %66 = vector.shape_cast %65 : vector<16xf32> to vector<16x1xf32>
    %67 = vector.broadcast %66 : vector<16x1xf32> to vector<16x16xf32>
    %68 = arith.subf %64, %67 : vector<16x16xf32>
    %69 = math.exp %68 : vector<16x16xf32>
    %cst_24 = arith.constant dense<0.000000e+00> : vector<16xf32>
    %70 = vector.multi_reduction <add>, %69, %cst_24 [1] : vector<16x16xf32> to vector<16xf32>
    %71 = vector.shape_cast %70 : vector<16xf32> to vector<16x1xf32>
    %72 = tpu.reciprocal %71 {approx = true} : vector<16x1xf32> -> vector<16x1xf32>
    %73 = vector.broadcast %72 : vector<16x1xf32> to vector<16x16xf32>
    %74 = arith.mulf %69, %73 : vector<16x16xf32>
    %cst_25 = arith.constant dense<0.000000e+00> : vector<16x8xf32>
    %75 = tpu.matmul %74, %62, %cst_25 {dimension_numbers = #tpu.dot_dimension_numbers<[1], [0], [0], [1], [0, 0, 1, 1], [], []>} : vector<16x16xf32>, vector<16x8xf32>, vector<16x8xf32> -> vector<16x8xf32>
    %76 = vector.extract_strided_slice %36 {offsets = [0, 16], sizes = [16, 8], strides = [1, 1]} : vector<16x32xf32> to vector<16x8xf32>
    %77 = vector.extract_strided_slice %41 {offsets = [0, 16], sizes = [16, 8], strides = [1, 1]} : vector<16x32xf32> to vector<16x8xf32>
    %78 = vector.extract_strided_slice %42 {offsets = [0, 16], sizes = [16, 8], strides = [1, 1]} : vector<16x32xf32> to vector<16x8xf32>
    %cst_26 = arith.constant dense<0.000000e+00> : vector<16x16xf32>
    %79 = tpu.matmul %76, %77, %cst_26 {dimension_numbers = #tpu.dot_dimension_numbers<[1], [1], [0], [0], [0, 0, 1, 0], [], []>} : vector<16x8xf32>, vector<16x8xf32>, vector<16x16xf32> -> vector<16x16xf32>
    %80 = arith.addf %79, %43 : vector<16x16xf32>
    %cst_27 = arith.constant dense<0xFF800000> : vector<16xf32>
    %81 = vector.multi_reduction <maximumf>, %80, %cst_27 [1] : vector<16x16xf32> to vector<16xf32>
    %82 = vector.shape_cast %81 : vector<16xf32> to vector<16x1xf32>
    %83 = vector.broadcast %82 : vector<16x1xf32> to vector<16x16xf32>
    %84 = arith.subf %80, %83 : vector<16x16xf32>
    %85 = math.exp %84 : vector<16x16xf32>
    %cst_28 = arith.constant dense<0.000000e+00> : vector<16xf32>
    %86 = vector.multi_reduction <add>, %85, %cst_28 [1] : vector<16x16xf32> to vector<16xf32>
    %87 = vector.shape_cast %86 : vector<16xf32> to vector<16x1xf32>
    %88 = tpu.reciprocal %87 {approx = true} : vector<16x1xf32> -> vector<16x1xf32>
    %89 = vector.broadcast %88 : vector<16x1xf32> to vector<16x16xf32>
    %90 = arith.mulf %85, %89 : vector<16x16xf32>
    %cst_29 = arith.constant dense<0.000000e+00> : vector<16x8xf32>
    %91 = tpu.matmul %90, %78, %cst_29 {dimension_numbers = #tpu.dot_dimension_numbers<[1], [0], [0], [1], [0, 0, 1, 1], [], []>} : vector<16x16xf32>, vector<16x8xf32>, vector<16x8xf32> -> vector<16x8xf32>
    %92 = vector.extract_strided_slice %36 {offsets = [0, 24], sizes = [16, 8], strides = [1, 1]} : vector<16x32xf32> to vector<16x8xf32>
    %93 = vector.extract_strided_slice %41 {offsets = [0, 24], sizes = [16, 8], strides = [1, 1]} : vector<16x32xf32> to vector<16x8xf32>
    %94 = vector.extract_strided_slice %42 {offsets = [0, 24], sizes = [16, 8], strides = [1, 1]} : vector<16x32xf32> to vector<16x8xf32>
    %cst_30 = arith.constant dense<0.000000e+00> : vector<16x16xf32>
    %95 = tpu.matmul %92, %93, %cst_30 {dimension_numbers = #tpu.dot_dimension_numbers<[1], [1], [0], [0], [0, 0, 1, 0], [], []>} : vector<16x8xf32>, vector<16x8xf32>, vector<16x16xf32> -> vector<16x16xf32>
    %96 = arith.addf %95, %43 : vector<16x16xf32>
    %cst_31 = arith.constant dense<0xFF800000> : vector<16xf32>
    %97 = vector.multi_reduction <maximumf>, %96, %cst_31 [1] : vector<16x16xf32> to vector<16xf32>
    %98 = vector.shape_cast %97 : vector<16xf32> to vector<16x1xf32>
    %99 = vector.broadcast %98 : vector<16x1xf32> to vector<16x16xf32>
    %100 = arith.subf %96, %99 : vector<16x16xf32>
    %101 = math.exp %100 : vector<16x16xf32>
    %cst_32 = arith.constant dense<0.000000e+00> : vector<16xf32>
    %102 = vector.multi_reduction <add>, %101, %cst_32 [1] : vector<16x16xf32> to vector<16xf32>
    %103 = vector.shape_cast %102 : vector<16xf32> to vector<16x1xf32>
    %104 = tpu.reciprocal %103 {approx = true} : vector<16x1xf32> -> vector<16x1xf32>
    %105 = vector.broadcast %104 : vector<16x1xf32> to vector<16x16xf32>
    %106 = arith.mulf %101, %105 : vector<16x16xf32>
    %cst_33 = arith.constant dense<0.000000e+00> : vector<16x8xf32>
    %107 = tpu.matmul %106, %94, %cst_33 {dimension_numbers = #tpu.dot_dimension_numbers<[1], [0], [0], [1], [0, 0, 1, 1], [], []>} : vector<16x16xf32>, vector<16x8xf32>, vector<16x8xf32> -> vector<16x8xf32>
    %108 = tpu.concatenate %59, %75, %91, %107 in 1 : vector<16x8xf32>, vector<16x8xf32>, vector<16x8xf32>, vector<16x8xf32> -> vector<16x32xf32>
    %c0_34 = arith.constant 0 : index
    %c0_35 = arith.constant 0 : index
    %109 = vector.load %arg7[%c0_34, %c0_35] : memref<32x32xf32, #tpu.memory_space<vmem>>, vector<32x32xf32>
    %cst_36 = arith.constant dense<0.000000e+00> : vector<16x32xf32>
    %110 = tpu.matmul %108, %109, %cst_36 {dimension_numbers = #tpu.dot_dimension_numbers<[1], [0], [0], [1], [0, 0, 1, 1], [], []>} : vector<16x32xf32>, vector<32x32xf32>, vector<16x32xf32> -> vector<16x32xf32>
    %111 = arith.addf %27, %110 : vector<16x32xf32>
    %112 = vector.extract_strided_slice %111 {offsets = [0, 0], sizes = [8, 32], strides = [1, 1]} : vector<16x32xf32> to vector<8x32xf32>
    %113 = vector.extract_strided_slice %111 {offsets = [8, 0], sizes = [8, 32], strides = [1, 1]} : vector<16x32xf32> to vector<8x32xf32>
    %114 = tpu.concatenate %112, %113 in 1 : vector<8x32xf32>, vector<8x32xf32> -> vector<8x64xf32>
    %cst_37 = arith.constant dense<0.000000e+00> : vector<8xf32>
    %115 = vector.multi_reduction <add>, %114, %cst_37 [1] : vector<8x64xf32> to vector<8xf32>
    %116 = vector.shape_cast %115 : vector<8xf32> to vector<8x1xf32>
    %cst_38 = arith.constant 6.400000e+01 : f32
    %117 = vector.broadcast %cst_38 : f32 to vector<8x1xf32>
    %118 = arith.divf %116, %117 : vector<8x1xf32>
    %119 = vector.broadcast %118 : vector<8x1xf32> to vector<8x64xf32>
    %120 = arith.subf %114, %119 : vector<8x64xf32>
    %121 = arith.mulf %120, %120 : vector<8x64xf32>
    %cst_39 = arith.constant dense<0.000000e+00> : vector<8xf32>
    %122 = vector.multi_reduction <add>, %121, %cst_39 [1] : vector<8x64xf32> to vector<8xf32>
    %123 = vector.shape_cast %122 : vector<8xf32> to vector<8x1xf32>
    %cst_40 = arith.constant 6.400000e+01 : f32
    %124 = vector.broadcast %cst_40 : f32 to vector<8x1xf32>
    %125 = arith.divf %123, %124 : vector<8x1xf32>
    %126 = vector.broadcast %118 : vector<8x1xf32> to vector<8x64xf32>
    %127 = arith.subf %114, %126 : vector<8x64xf32>
    %cst_41 = arith.constant 9.99999974E-6 : f32
    %128 = vector.broadcast %cst_41 : f32 to vector<8x1xf32>
    %129 = arith.addf %125, %128 : vector<8x1xf32>
    %130 = math.rsqrt %129 : vector<8x1xf32>
    %131 = vector.broadcast %130 : vector<8x1xf32> to vector<8x64xf32>
    %132 = arith.mulf %127, %131 : vector<8x64xf32>
    %c0_42 = arith.constant 0 : index
    %c0_43 = arith.constant 0 : index
    %133 = vector.load %arg8[%c0_42, %c0_43] : memref<1x64xf32, #tpu.memory_space<vmem>>, vector<1x64xf32>
    %134 = vector.broadcast %133 : vector<1x64xf32> to vector<8x64xf32>
    %135 = arith.mulf %132, %134 : vector<8x64xf32>
    %c0_44 = arith.constant 0 : index
    %c0_45 = arith.constant 0 : index
    %136 = vector.load %arg9[%c0_44, %c0_45] : memref<1x64xf32, #tpu.memory_space<vmem>>, vector<1x64xf32>
    %137 = vector.broadcast %136 : vector<1x64xf32> to vector<8x64xf32>
    %138 = arith.addf %135, %137 : vector<8x64xf32>
    %c0_46 = arith.constant 0 : index
    %c0_47 = arith.constant 0 : index
    %139 = vector.load %arg10[%c0_46, %c0_47] : memref<64x64xf32, #tpu.memory_space<vmem>>, vector<64x64xf32>
    %cst_48 = arith.constant dense<0.000000e+00> : vector<8x64xf32>
    %140 = tpu.matmul %114, %139, %cst_48 {dimension_numbers = #tpu.dot_dimension_numbers<[1], [0], [0], [1], [0, 0, 1, 1], [], []>} : vector<8x64xf32>, vector<64x64xf32>, vector<8x64xf32> -> vector<8x64xf32>
    %c0_49 = arith.constant 0 : index
    %c0_50 = arith.constant 0 : index
    %141 = vector.load %arg11[%c0_49, %c0_50] : memref<64x512xf32, #tpu.memory_space<vmem>>, vector<64x512xf32>
    %cst_51 = arith.constant dense<0.000000e+00> : vector<8x512xf32>
    %142 = tpu.matmul %138, %141, %cst_51 {dimension_numbers = #tpu.dot_dimension_numbers<[1], [0], [0], [1], [0, 0, 1, 1], [], []>} : vector<8x64xf32>, vector<64x512xf32>, vector<8x512xf32> -> vector<8x512xf32>
    %143 = vector.extract_strided_slice %142 {offsets = [0, 0], sizes = [8, 256], strides = [1, 1]} : vector<8x512xf32> to vector<8x256xf32>
    %144 = vector.extract_strided_slice %142 {offsets = [0, 256], sizes = [8, 256], strides = [1, 1]} : vector<8x512xf32> to vector<8x256xf32>
    %145 = arith.negf %144 : vector<8x256xf32>
    %146 = math.exp %145 : vector<8x256xf32>
    %cst_52 = arith.constant 1.000000e+00 : f32
    %147 = vector.broadcast %cst_52 : f32 to vector<8x256xf32>
    %148 = arith.addf %147, %146 : vector<8x256xf32>
    %149 = arith.divf %147, %148 : vector<8x256xf32>
    %150 = arith.mulf %144, %149 : vector<8x256xf32>
    %151 = arith.mulf %143, %150 : vector<8x256xf32>
    %c0_53 = arith.constant 0 : index
    %c0_54 = arith.constant 0 : index
    %152 = vector.load %arg12[%c0_53, %c0_54] : memref<256x64xf32, #tpu.memory_space<vmem>>, vector<256x64xf32>
    %cst_55 = arith.constant dense<0.000000e+00> : vector<8x64xf32>
    %153 = tpu.matmul %151, %152, %cst_55 {dimension_numbers = #tpu.dot_dimension_numbers<[1], [0], [0], [1], [0, 0, 1, 1], [], []>} : vector<8x256xf32>, vector<256x64xf32>, vector<8x64xf32> -> vector<8x64xf32>
    %154 = arith.addf %140, %153 : vector<8x64xf32>
    %c0_56 = arith.constant 0 : index
    %c0_57 = arith.constant 0 : index
    %155 = vector.load %arg13[%c0_56, %c0_57] : memref<8x64xf32, #tpu.memory_space<vmem>>, vector<8x64xf32>
    tpu.vector_store %arg13[%c0_56, %c0_57], %154 {strides = array<i32>} : memref<8x64xf32, #tpu.memory_space<vmem>>, vector<8x64xf32>,
    return
  }
}

</mosaic_0001>

<llo_original>
// kernel: tile.23
$region0: #{tile.23}
  #allocation0 [shape = 's32[1]{0}', space=sflag, size = 0x4, scoped, tag = 'scoped memory for tile.23']
  %s0 = inlined_call_operand.vmem [shape: s32[4], index: 0, kind: input, shape index: {}]
  %s1 = inlined_call_operand.vmem [shape: s32[2,4], index: 1, kind: output, shape index: {}]
  // Predicated region
  $region2: #{tile.23} parent=0 // pred_check
    _
  $region3: #{tile.23} parent=0 // pred_check_branch
    %3 = sbr.rel (0) target = $region5
  $region4: #{tile.23} parent=0 // pred_region
    _
  $region5: #{tile.23} parent=0 // pred_fallthru
    _
  %v4 = vld [vmem:[%s0] ss:$0 sm:$0xff]
  %5 = vst [vmem:[%s1] sm:$0x3] %v4

// kernel: _neural_encoder_layer.1
$region0: #{_neural_encoder_layer.1}
  #allocation0 [shape = 'u32[]', space=smem, size = 0x4, offset = 0x4, fixed_abs, tag = 'smem constant byte address 0x4 - core index']
  #allocation1 [shape = 'u32[144,128]{1,0:T(1,128)}', space=vmem, size = 0x12000, scoped, tag = 'internal scratch']
  %s0 = inlined_call_operand.vmem [shape: f32[8,64], index: 0, kind: input, shape index: {}]
  %s1 = inlined_call_operand.vmem [shape: f32[16,32], index: 1, kind: input, shape index: {}]
  %s2 = inlined_call_operand.vmem [shape: f32[16,32], index: 2, kind: input, shape index: {}]
  %s3 = inlined_call_operand.vmem [shape: f32[16,16], index: 3, kind: input, shape index: {}]
  %s4 = inlined_call_operand.vmem [shape: f32[1,32], index: 4, kind: input, shape index: {}]
  %s5 = inlined_call_operand.vmem [shape: f32[1,32], index: 5, kind: input, shape index: {}]
  %s6 = inlined_call_operand.vmem [shape: f32[32,160], index: 6, kind: input, shape index: {}]
  %s7 = inlined_call_operand.vmem [shape: f32[32,32], index: 7, kind: input, shape index: {}]
  %s8 = inlined_call_operand.vmem [shape: f32[1,64], index: 8, kind: input, shape index: {}]
  %s9 = inlined_call_operand.vmem [shape: f32[1,64], index: 9, kind: input, shape index: {}]
  %s10 = inlined_call_operand.vmem [shape: f32[64,64], index: 10, kind: input, shape index: {}]
  %s11 = inlined_call_operand.vmem [shape: f32[64,512], index: 11, kind: input, shape index: {}]
  %s12 = inlined_call_operand.vmem [shape: f32[256,64], index: 12, kind: input, shape index: {}]
  %s13 = inlined_call_operand.hbm [shape: f32[8,64], index: 13, kind: output, shape index: {}]
  %s14 = sld [smem:[#allocation0]]
  $region62: #{_neural_encoder_layer.1} parent=0
    _
  %s16 = ssub.s32 1, %s14
  %s17 = scalar_select 0, %s16, %s14
  $region1: #{_neural_encoder_layer.1} parent=0
    #allocation2 [shape = 'u8[4096]{0}', space=vmem, size = 0x1000, scoped, tag = 'output window, operand 0, single buffered']
    #allocation3 [shape = 's32[1]{0}', space=sflag, size = 0x4, scoped, tag = 'scoped memory for _neural_encoder_layer.1']
    %18 = vsyncpa [#allocation3], 0
    // Predicated region
    $region2: #{_neural_encoder_layer.1} parent=1 // pred_check
      _
    $region3: #{_neural_encoder_layer.1} parent=1 // pred_check_branch
      %20 = sbr.rel (0) target = $region5
    $region4: #{_neural_encoder_layer.1} parent=1 // pred_region
      _
    $region5: #{_neural_encoder_layer.1} parent=1 // pred_fallthru
      _
    // Predicated region
    $region6: #{_neural_encoder_layer.1} parent=1 // pred_check
      _
    $region7: #{_neural_encoder_layer.1} parent=1 // pred_check_branch
      %22 = sbr.rel (0) target = $region9
    $region8: #{_neural_encoder_layer.1} parent=1 // pred_region
      _
    $region9: #{_neural_encoder_layer.1} parent=1 // pred_fallthru
      _
    // Predicated region
    $region10: #{_neural_encoder_layer.1} parent=1 // pred_check
      _
    $region11: #{_neural_encoder_layer.1} parent=1 // pred_check_branch
      %24 = sbr.rel (0) target = $region13
    $region12: #{_neural_encoder_layer.1} parent=1 // pred_region
      _
    $region13: #{_neural_encoder_layer.1} parent=1 // pred_fallthru
      _
    // Predicated region
    $region14: #{_neural_encoder_layer.1} parent=1 // pred_check
      _
    $region15: #{_neural_encoder_layer.1} parent=1 // pred_check_branch
      %26 = sbr.rel (0) target = $region17
    $region16: #{_neural_encoder_layer.1} parent=1 // pred_region
      _
    $region17: #{_neural_encoder_layer.1} parent=1 // pred_fallthru
      _
    // Predicated region
    $region18: #{_neural_encoder_layer.1} parent=1 // pred_check
      _
    $region19: #{_neural_encoder_layer.1} parent=1 // pred_check_branch
      %28 = sbr.rel (0) target = $region21
    $region20: #{_neural_encoder_layer.1} parent=1 // pred_region
      _
    $region21: #{_neural_encoder_layer.1} parent=1 // pred_fallthru
      _
    // Predicated region
    $region22: #{_neural_encoder_layer.1} parent=1 // pred_check
      _
    $region23: #{_neural_encoder_layer.1} parent=1 // pred_check_branch
      %30 = sbr.rel (0) target = $region25
    $region24: #{_neural_encoder_layer.1} parent=1 // pred_region
      _
    $region25: #{_neural_encoder_layer.1} parent=1 // pred_fallthru
      _
    // Predicated region
    $region26: #{_neural_encoder_layer.1} parent=1 // pred_check
      _
    $region27: #{_neural_encoder_layer.1} parent=1 // pred_check_branch
      %32 = sbr.rel (0) target = $region29
    $region28: #{_neural_encoder_layer.1} parent=1 // pred_region
      _
    $region29: #{_neural_encoder_layer.1} parent=1 // pred_fallthru
      _
    // Predicated region
    $region30: #{_neural_encoder_layer.1} parent=1 // pred_check
      _
    $region31: #{_neural_encoder_layer.1} parent=1 // pred_check_branch
      %34 = sbr.rel (0) target = $region33
    $region32: #{_neural_encoder_layer.1} parent=1 // pred_region
      _
    $region33: #{_neural_encoder_layer.1} parent=1 // pred_fallthru
      _
    // Predicated region
    $region34: #{_neural_encoder_layer.1} parent=1 // pred_check
      _
    $region35: #{_neural_encoder_layer.1} parent=1 // pred_check_branch
      %36 = sbr.rel (0) target = $region37
    $region36: #{_neural_encoder_layer.1} parent=1 // pred_region
      _
    $region37: #{_neural_encoder_layer.1} parent=1 // pred_fallthru
      _
    // Predicated region
    $region38: #{_neural_encoder_layer.1} parent=1 // pred_check
      _
    $region39: #{_neural_encoder_layer.1} parent=1 // pred_check_branch
      %38 = sbr.rel (0) target = $region41
    $region40: #{_neural_encoder_layer.1} parent=1 // pred_region
      _
    $region41: #{_neural_encoder_layer.1} parent=1 // pred_fallthru
      _
    // Predicated region
    $region42: #{_neural_encoder_layer.1} parent=1 // pred_check
      _
    $region43: #{_neural_encoder_layer.1} parent=1 // pred_check_branch
      %40 = sbr.rel (0) target = $region45
    $region44: #{_neural_encoder_layer.1} parent=1 // pred_region
      _
    $region45: #{_neural_encoder_layer.1} parent=1 // pred_fallthru
      _
    // Predicated region
    $region46: #{_neural_encoder_layer.1} parent=1 // pred_check
      _
    $region47: #{_neural_encoder_layer.1} parent=1 // pred_check_branch
      %42 = sbr.rel (0) target = $region49
    $region48: #{_neural_encoder_layer.1} parent=1 // pred_region
      _
    $region49: #{_neural_encoder_layer.1} parent=1 // pred_fallthru
      _
    // Predicated region
    $region50: #{_neural_encoder_layer.1} parent=1 // pred_check
      _
    $region51: #{_neural_encoder_layer.1} parent=1 // pred_check_branch
      %44 = sbr.rel (0) target = $region53
    $region52: #{_neural_encoder_layer.1} parent=1 // pred_region
      _
    $region53: #{_neural_encoder_layer.1} parent=1 // pred_fallthru
      _
    %v45 = vld [vmem:[%s0] sm:$0xff]
    %47 = vrot.lane.b32.xlu0 %v45, 96
    %v48 = vpop.permute.xlu0 %47
    %vm50 = vcmask 261120
    %v51 = vsel %vm50, %v45, 0.0
    %52 = vadd.xlane.f32.xlu0 %v51
    %v53 = vpop.xlane.xlu0 %52
    %v54 = vsel %vm50, %v48, 0.0
    %55 = vadd.xlane.f32.xlu0 %v54
    %v56 = vpop.xlane.xlu0 %55
    %v57 = vrcp.pop 32.0
    %v58 = vmul.f32 %v53, %v57
    %v59 = vmul.f32 %v56, %v57
    %v60 = vsub.f32 %v45, %v58
    %v61 = vsub.f32 %v48, %v59
    %v62 = vmul.f32 %v60, %v60
    %v63 = vmul.f32 %v61, %v61
    %v64 = vsel %vm50, %v62, 0.0
    %65 = vadd.xlane.f32.xlu0 %v64
    %v66 = vpop.xlane.xlu0 %65
    %v67 = vsel %vm50, %v63, 0.0
    %68 = vadd.xlane.f32.xlu0 %v67
    %v69 = vpop.xlane.xlu0 %68
    %v70 = vmul.f32 %v66, %v57
    %v71 = vmul.f32 %v69, %v57
    %v72 = vadd.f32 %v70, 1e-05
    %v73 = vadd.f32 %v71, 1e-05
    %v74 = vrsqrt.pop %v72
    %v75 = vrsqrt.pop %v73
    %v76 = vmul.f32 %v60, %v74
    %v77 = vmul.f32 %v61, %v75
    %v78 = vld [vmem:[%s4] sm:$0x1]
    %v80 = vlaneseq
    %v81 = vshrl.u32 %v80, 7
    %v82 = vsub.s32 0, %v81
    %v83 = vrot.slane %v78, %v82
    %v85 = vmul.f32 %v76, %v83
    %v86 = vmul.f32 %v77, %v83
    %v87 = vld [vmem:[%s5] sm:$0x1]
    %v89 = vlaneseq
    %v90 = vshrl.u32 %v89, 7
    %v91 = vsub.s32 0, %v90
    %v92 = vrot.slane %v87, %v91
    %v94 = vadd.f32 %v85, %v92
    %v95 = vadd.f32 %v86, %v92
    %v96 = vld [vmem:[%s6] sm:$0xff]
    %v97 = vld [vmem:[%s6 + $0x8] sm:$0xff]
    %v98 = vld [vmem:[%s6 + $0x10] sm:$0xff]
    %v99 = vld [vmem:[%s6 + $0x18] sm:$0xff]
    %v100 = vld [vmem:[%s6 + $0x20] sm:$0xff]
    %v101 = vld [vmem:[%s6 + $0x28] sm:$0xff]
    %v102 = vld [vmem:[%s6 + $0x30] sm:$0xff]
    %v103 = vld [vmem:[%s6 + $0x38] sm:$0xff]
    %v105 = vsel %vm50, %v94, 0
    %v108 = vsel %vm50, %v95, 0
    %110 = vmatprep.subr.mxu0 0.0
    %111 = vmatpush1.msra.mxu0 0.0
    %112 = vmatprep.subr.mxu0 0.0
    %113 = vmatpush1.msra.mxu0 0.0
    %114 = vmatprep.subr.mxu0 0.0
    %115 = vmatpush1.msra.mxu0 0.0
    %116 = vmatprep.subr.mxu0 0.0
    %117 = vmatpush1.msra.mxu0 0.0
    %118 = vmatprep.subr.mxu0 0.0
    %119 = vmatpush1.msra.mxu0 0.0
    %120 = vmatprep.subr.mxu0 0.0
    %121 = vmatpush1.msra.mxu0 0.0
    %122 = vmatprep.subr.mxu0 0.0
    %123 = vmatpush1.msra.mxu0 0.0
    %124 = vmatprep.subr.mxu0 0.0
    %125 = vmatpush1.msra.mxu0 0.0
    %126 = vmatprep.subr.mxu0 0.0
    %127 = vmatpush1.msra.mxu0 0.0
    %128 = vmatprep.subr.mxu0 0.0
    %129 = vmatpush1.msra.mxu0 0.0
    %130 = vmatprep.subr.mxu0 0.0
    %131 = vmatpush1.msra.mxu0 0.0
    %132 = vmatprep.subr.mxu0 0.0
    %133 = vmatpush1.msra.mxu0 0.0
    %134 = vmatprep.subr.mxu0 %v103
    %135 = vmatpush1.msra.mxu0 %v102
    %136 = vmatprep.subr.mxu0 %v101
    %137 = vmatpush1.msra.mxu0 %v100
    %138 = vmatprep.subr.mxu0 %v99
    %139 = vmatpush1.msra.mxu0 %v98
    %140 = vmatprep.subr.mxu0 %v97
    %141 = vmatpush1.msra.mxu0 %v96
    %142 = vmatprep.subr.mxu0 0.0
    %143 = vmatpush2.msra.mxu0 0.0
    %144 = vmatprep.subr.mxu0 0.0
    %145 = vmatpush2.msra.mxu0 0.0
    %146 = vmatprep.subr.mxu0 0.0
    %147 = vmatpush2.msra.mxu0 0.0
    %148 = vmatprep.subr.mxu0 0.0
    %149 = vmatpush2.msra.mxu0 0.0
    %150 = vmatprep.subr.mxu0 0.0
    %151 = vmatpush2.msra.mxu0 0.0
    %152 = vmatprep.subr.mxu0 0.0
    %153 = vmatpush2.msra.mxu0 0.0
    %154 = vmatprep.subr.mxu0 0.0
    %155 = vmatpush2.msra.mxu0 0.0
    %156 = vmatprep.subr.mxu0 0.0
    %157 = vmatpush2.msra.mxu0 0.0
    %158 = vmatprep.subr.mxu0 0.0
    %159 = vmatpush2.msra.mxu0 0.0
    %160 = vmatprep.subr.mxu0 0.0
    %161 = vmatpush2.msra.mxu0 0.0
    %162 = vmatprep.subr.mxu0 0.0
    %163 = vmatpush2.msra.mxu0 0.0
    %164 = vmatprep.subr.mxu0 0.0
    %165 = vmatpush2.msra.mxu0 0.0
    %166 = vmatprep.subr.mxu0 0.0
    %167 = vmatpush2.msra.mxu0 0.0
    %168 = vmatprep.subr.mxu0 0.0
    %169 = vmatpush2.msra.mxu0 0.0
    %170 = vmatprep.subr.mxu0 0.0
    %171 = vmatpush2.msra.mxu0 0.0
    %172 = vmatprep.subr.mxu0 0.0
    %173 = vmatpush2.msra.mxu0 0.0
    %174 = vmatprep.mubr.f32.mxu0 0.0
    %175 = vmatmul.mubr.f32.gmra.mxu0 %v105
    %v176 = vpop.f32.mrf.mxu0
    %v177 = vadd.f32 0.0, %v176
    %v178 = vpop.f32.mrf.mxu0
    %v179 = vadd.f32 0.0, %v178
    %180 = vmatprep.mubr.f32.mxu0 0.0
    %181 = vmatmul.mubr.f32.gmra.mxu0 %v108
    %v182 = vpop.f32.mrf.mxu0
    %v183 = vadd.f32 0.0, %v182
    %v184 = vpop.f32.mrf.mxu0
    %v185 = vadd.f32 0.0, %v184
    %186 = vdwg.mxu0
    %v187 = vld [vmem:[%s1] sm:$0xff]
    %v188 = vld [vmem:[%s1 + $0x8] sm:$0xff]
    %v189 = vld [vmem:[%s2] sm:$0xff]
    %v190 = vld [vmem:[%s2 + $0x8] sm:$0xff]
    %v191 = vmul.f32 %v177, %v187
    %v192 = vmul.f32 %v183, %v188
    %195 = vrot.lane.b32.xlu0 %v189, 32
    %v196 = vpop.permute.xlu0 %195
    %197 = vrot.lane.b32.xlu0 %v190, 32
    %v198 = vpop.permute.xlu0 %197
    %v201 = vmul.f32 %v177, %v196
    %v202 = vmul.f32 %v183, %v198
    %205 = vrot.lane.b32.xlu0 %v201, 96
    %v206 = vpop.permute.xlu0 %205
    %207 = vrot.lane.b32.xlu0 %v202, 96
    %v208 = vpop.permute.xlu0 %207
    %v211 = vadd.f32 %v191, %v206
    %v212 = vadd.f32 %v192, %v208
    %215 = vrot.lane.b32.xlu0 %v187, 64
    %v216 = vpop.permute.xlu0 %215
    %217 = vrot.lane.b32.xlu0 %v188, 64
    %v218 = vpop.permute.xlu0 %217
    %v221 = vmul.f32 %v177, %v216
    %v222 = vmul.f32 %v183, %v218
    %223 = vrot.lane.b32.xlu0 %v189, 96
    %v224 = vpop.permute.xlu0 %223
    %225 = vrot.lane.b32.xlu0 %v190, 96
    %v226 = vpop.permute.xlu0 %225
    %v229 = vmul.f32 %v177, %v224
    %v230 = vmul.f32 %v183, %v226
    %233 = vrot.lane.b32.xlu0 %v229, 96
    %v234 = vpop.permute.xlu0 %233
    %235 = vrot.lane.b32.xlu0 %v230, 96
    %v236 = vpop.permute.xlu0 %235
    %v239 = vadd.f32 %v221, %v234
    %v240 = vadd.f32 %v222, %v236
    %v241 = vld [vmem:[%s3] sm:$0xff]
    %v242 = vld [vmem:[%s3 + $0x8] sm:$0xff]
    %245 = vrot.lane.b32.xlu0 %v239, 64
    %v246 = vpop.permute.xlu0 %245
    %247 = vrot.lane.b32.xlu0 %v240, 64
    %v248 = vpop.permute.xlu0 %247
    %vm249 = vcmask 64512
    %v251 = vsel %vm249, %v211, 0
    %v254 = vsel %vm249, %v212, 0
    %v256 = vsel %vm249, %v246, 0
    %v258 = vsel %vm249, %v248, 0
    %260 = vmatprep.subr.mxu0 0.0
    %261 = vmatpush1.xpose.msra.mxu0 0.0
    %262 = vmatprep.subr.mxu0 0.0
    %263 = vmatpush1.xpose.msra.mxu0 0.0
    %264 = vmatprep.subr.mxu0 0.0
    %265 = vmatpush1.xpose.msra.mxu0 0.0
    %266 = vmatprep.subr.mxu0 0.0
    %267 = vmatpush1.xpose.msra.mxu0 0.0
    %268 = vmatprep.subr.mxu0 0.0
    %269 = vmatpush1.xpose.msra.mxu0 0.0
    %270 = vmatprep.subr.mxu0 0.0
    %271 = vmatpush1.xpose.msra.mxu0 0.0
    %272 = vmatprep.subr.mxu0 0.0
    %273 = vmatpush1.xpose.msra.mxu0 0.0
    %274 = vmatprep.subr.mxu0 0.0
    %275 = vmatpush1.xpose.msra.mxu0 0.0
    %276 = vmatprep.subr.mxu0 0.0
    %277 = vmatpush1.xpose.msra.mxu0 0.0
    %278 = vmatprep.subr.mxu0 0.0
    %279 = vmatpush1.xpose.msra.mxu0 0.0
    %280 = vmatprep.subr.mxu0 0.0
    %281 = vmatpush1.xpose.msra.mxu0 0.0
    %282 = vmatprep.subr.mxu0 0.0
    %283 = vmatpush1.xpose.msra.mxu0 0.0
    %284 = vmatprep.subr.mxu0 0.0
    %285 = vmatpush1.xpose.msra.mxu0 0.0
    %286 = vmatprep.subr.mxu0 0.0
    %287 = vmatpush1.xpose.msra.mxu0 0.0
    %288 = vmatprep.subr.mxu0 0.0
    %289 = vmatpush1.xpose.msra.mxu0 %v258
    %290 = vmatprep.subr.mxu0 0.0
    %291 = vmatpush1.xpose.msra.mxu0 %v256
    %292 = vmatprep.subr.mxu0 0.0
    %293 = vmatpush2.xpose.msra.mxu0 0.0
    %294 = vmatprep.subr.mxu0 0.0
    %295 = vmatpush2.xpose.msra.mxu0 0.0
    %296 = vmatprep.subr.mxu0 0.0
    %297 = vmatpush2.xpose.msra.mxu0 0.0
    %298 = vmatprep.subr.mxu0 0.0
    %299 = vmatpush2.xpose.msra.mxu0 0.0
    %300 = vmatprep.subr.mxu0 0.0
    %301 = vmatpush2.xpose.msra.mxu0 0.0
    %302 = vmatprep.subr.mxu0 0.0
    %303 = vmatpush2.xpose.msra.mxu0 0.0
    %304 = vmatprep.subr.mxu0 0.0
    %305 = vmatpush2.xpose.msra.mxu0 0.0
    %306 = vmatprep.subr.mxu0 0.0
    %307 = vmatpush2.xpose.msra.mxu0 0.0
    %308 = vmatprep.subr.mxu0 0.0
    %309 = vmatpush2.xpose.msra.mxu0 0.0
    %310 = vmatprep.subr.mxu0 0.0
    %311 = vmatpush2.xpose.msra.mxu0 0.0
    %312 = vmatprep.subr.mxu0 0.0
    %313 = vmatpush2.xpose.msra.mxu0 0.0
    %314 = vmatprep.subr.mxu0 0.0
    %315 = vmatpush2.xpose.msra.mxu0 0.0
    %316 = vmatprep.subr.mxu0 0.0
    %317 = vmatpush2.xpose.msra.mxu0 0.0
    %318 = vmatprep.subr.mxu0 0.0
    %319 = vmatpush2.xpose.msra.mxu0 0.0
    %320 = vmatprep.subr.mxu0 0.0
    %321 = vmatpush2.xpose.msra.mxu0 0.0
    %322 = vmatprep.subr.mxu0 0.0
    %323 = vmatpush2.xpose.msra.mxu0 0.0
    %324 = vmatprep.mubr.f32.mxu0 0.0
    %325 = vmatmul.mubr.f32.gmra.mxu0 %v251
    %v326 = vpop.f32.mrf.mxu0
    %v327 = vadd.f32 %v241, %v326
    %v328 = vpop.f32.mrf.mxu0
    %329 = vmatprep.mubr.f32.mxu0 0.0
    %330 = vmatmul.mubr.f32.gmra.mxu0 %v254
    %v331 = vpop.f32.mrf.mxu0
    %v332 = vadd.f32 %v242, %v331
    %v333 = vpop.f32.mrf.mxu0
    %334 = vdwg.mxu0
    %vm335 = vcmask 130048
    %v336 = vsel %vm335, %v327, -inf
    %337 = vmax.xlane.f32.xlu0 %v336
    %v338 = vpop.xlane.xlu0 %337
    %v339 = vsel %vm335, %v332, -inf
    %340 = vmax.xlane.f32.xlu0 %v339
    %v341 = vpop.xlane.xlu0 %340
    %v342 = vsub.f32 %v327, %v338
    %v343 = vsub.f32 %v332, %v341
    %v344 = vmul.f32 %v342, 1.442695
    %v345 = vpow.pop %v344
    %v346 = vmul.f32 %v343, 1.442695
    %v347 = vpow.pop %v346
    %v348 = vsel %vm335, %v345, 0.0
    %349 = vadd.xlane.f32.xlu0 %v348
    %v350 = vpop.xlane.xlu0 %349
    %v351 = vsel %vm335, %v347, 0.0
    %352 = vadd.xlane.f32.xlu0 %v351
    %v353 = vpop.xlane.xlu0 %352
    %v354 = vrcp.pop %v350
    %v355 = vrcp.pop %v353
    %v356 = vmul.f32 %v345, %v354
    %v357 = vmul.f32 %v347, %v355
    %v359 = vsel %vm335, %v356, 0
    %v362 = vsel %vm335, %v357, 0
    %364 = vmatprep.subr.mxu0 0.0
    %365 = vmatpush1.msra.mxu0 0.0
    %366 = vmatprep.subr.mxu0 0.0
    %367 = vmatpush1.msra.mxu0 0.0
    %368 = vmatprep.subr.mxu0 0.0
    %369 = vmatpush1.msra.mxu0 0.0
    %370 = vmatprep.subr.mxu0 0.0
    %371 = vmatpush1.msra.mxu0 0.0
    %372 = vmatprep.subr.mxu0 0.0
    %373 = vmatpush1.msra.mxu0 0.0
    %374 = vmatprep.subr.mxu0 0.0
    %375 = vmatpush1.msra.mxu0 0.0
    %376 = vmatprep.subr.mxu0 0.0
    %377 = vmatpush1.msra.mxu0 0.0
    %378 = vmatprep.subr.mxu0 0.0
    %379 = vmatpush1.msra.mxu0 0.0
    %380 = vmatprep.subr.mxu0 0.0
    %381 = vmatpush1.msra.mxu0 0.0
    %382 = vmatprep.subr.mxu0 0.0
    %383 = vmatpush1.msra.mxu0 0.0
    %384 = vmatprep.subr.mxu0 0.0
    %385 = vmatpush1.msra.mxu0 0.0
    %386 = vmatprep.subr.mxu0 0.0
    %387 = vmatpush1.msra.mxu0 0.0
    %388 = vmatprep.subr.mxu0 0.0
    %389 = vmatpush1.msra.mxu0 0.0
    %390 = vmatprep.subr.mxu0 0.0
    %391 = vmatpush1.msra.mxu0 0.0
    %392 = vmatprep.subr.mxu0 0.0
    %393 = vmatpush1.msra.mxu0 %v185
    %394 = vmatprep.subr.mxu0 0.0
    %395 = vmatpush1.msra.mxu0 %v179
    %396 = vmatprep.subr.mxu0 0.0
    %397 = vmatpush2.msra.mxu0 0.0
    %398 = vmatprep.subr.mxu0 0.0
    %399 = vmatpush2.msra.mxu0 0.0
    %400 = vmatprep.subr.mxu0 0.0
    %401 = vmatpush2.msra.mxu0 0.0
    %402 = vmatprep.subr.mxu0 0.0
    %403 = vmatpush2.msra.mxu0 0.0
    %404 = vmatprep.subr.mxu0 0.0
    %405 = vmatpush2.msra.mxu0 0.0
    %406 = vmatprep.subr.mxu0 0.0
    %407 = vmatpush2.msra.mxu0 0.0
    %408 = vmatprep.subr.mxu0 0.0
    %409 = vmatpush2.msra.mxu0 0.0
    %410 = vmatprep.subr.mxu0 0.0
    %411 = vmatpush2.msra.mxu0 0.0
    %412 = vmatprep.subr.mxu0 0.0
    %413 = vmatpush2.msra.mxu0 0.0
    %414 = vmatprep.subr.mxu0 0.0
    %415 = vmatpush2.msra.mxu0 0.0
    %416 = vmatprep.subr.mxu0 0.0
    %417 = vmatpush2.msra.mxu0 0.0
    %418 = vmatprep.subr.mxu0 0.0
    %419 = vmatpush2.msra.mxu0 0.0
    %420 = vmatprep.subr.mxu0 0.0
    %421 = vmatpush2.msra.mxu0 0.0
    %422 = vmatprep.subr.mxu0 0.0
    %423 = vmatpush2.msra.mxu0 0.0
    %424 = vmatprep.subr.mxu0 0.0
    %425 = vmatpush2.msra.mxu0 0.0
    %426 = vmatprep.subr.mxu0 0.0
    %427 = vmatpush2.msra.mxu0 0.0
    %428 = vmatprep.mubr.f32.mxu0 0.0
    %429 = vmatmul.mubr.f32.gmra.mxu0 %v359
    %v430 = vpop.f32.mrf.mxu0
    %v431 = vadd.f32 0.0, %v430
    %v432 = vpop.f32.mrf.mxu0
    %433 = vmatprep.mubr.f32.mxu0 0.0
    %434 = vmatmul.mubr.f32.gmra.mxu0 %v362
    %v435 = vpop.f32.mrf.mxu0
    %v436 = vadd.f32 0.0, %v435
    %v437 = vpop.f32.mrf.mxu0
    %438 = vdwg.mxu0
    %439 = vrot.lane.b32.xlu0 %v211, 120
    %v440 = vpop.permute.xlu0 %439
    %441 = vrot.lane.b32.xlu0 %v212, 120
    %v442 = vpop.permute.xlu0 %441
    %443 = vrot.lane.b32.xlu0 %v239, 56
    %v444 = vpop.permute.xlu0 %443
    %445 = vrot.lane.b32.xlu0 %v240, 56
    %v446 = vpop.permute.xlu0 %445
    %v447 = vsel %vm249, %v440, 0
    %v449 = vsel %vm249, %v442, 0
    %v451 = vsel %vm249, %v444, 0
    %v453 = vsel %vm249, %v446, 0
    %455 = vmatprep.subr.mxu0 0.0
    %456 = vmatpush1.xpose.msra.mxu0 0.0
    %457 = vmatprep.subr.mxu0 0.0
    %458 = vmatpush1.xpose.msra.mxu0 0.0
    %459 = vmatprep.subr.mxu0 0.0
    %460 = vmatpush1.xpose.msra.mxu0 0.0
    %461 = vmatprep.subr.mxu0 0.0
    %462 = vmatpush1.xpose.msra.mxu0 0.0
    %463 = vmatprep.subr.mxu0 0.0
    %464 = vmatpush1.xpose.msra.mxu0 0.0
    %465 = vmatprep.subr.mxu0 0.0
    %466 = vmatpush1.xpose.msra.mxu0 0.0
    %467 = vmatprep.subr.mxu0 0.0
    %468 = vmatpush1.xpose.msra.mxu0 0.0
    %469 = vmatprep.subr.mxu0 0.0
    %470 = vmatpush1.xpose.msra.mxu0 0.0
    %471 = vmatprep.subr.mxu0 0.0
    %472 = vmatpush1.xpose.msra.mxu0 0.0
    %473 = vmatprep.subr.mxu0 0.0
    %474 = vmatpush1.xpose.msra.mxu0 0.0
    %475 = vmatprep.subr.mxu0 0.0
    %476 = vmatpush1.xpose.msra.mxu0 0.0
    %477 = vmatprep.subr.mxu0 0.0
    %478 = vmatpush1.xpose.msra.mxu0 0.0
    %479 = vmatprep.subr.mxu0 0.0
    %480 = vmatpush1.xpose.msra.mxu0 0.0
    %481 = vmatprep.subr.mxu0 0.0
    %482 = vmatpush1.xpose.msra.mxu0 0.0
    %483 = vmatprep.subr.mxu0 0.0
    %484 = vmatpush1.xpose.msra.mxu0 %v453
    %485 = vmatprep.subr.mxu0 0.0
    %486 = vmatpush1.xpose.msra.mxu0 %v451
    %487 = vmatprep.subr.mxu0 0.0
    %488 = vmatpush2.xpose.msra.mxu0 0.0
    %489 = vmatprep.subr.mxu0 0.0
    %490 = vmatpush2.xpose.msra.mxu0 0.0
    %491 = vmatprep.subr.mxu0 0.0
    %492 = vmatpush2.xpose.msra.mxu0 0.0
    %493 = vmatprep.subr.mxu0 0.0
    %494 = vmatpush2.xpose.msra.mxu0 0.0
    %495 = vmatprep.subr.mxu0 0.0
    %496 = vmatpush2.xpose.msra.mxu0 0.0
    %497 = vmatprep.subr.mxu0 0.0
    %498 = vmatpush2.xpose.msra.mxu0 0.0
    %499 = vmatprep.subr.mxu0 0.0
    %500 = vmatpush2.xpose.msra.mxu0 0.0
    %501 = vmatprep.subr.mxu0 0.0
    %502 = vmatpush2.xpose.msra.mxu0 0.0
    %503 = vmatprep.subr.mxu0 0.0
    %504 = vmatpush2.xpose.msra.mxu0 0.0
    %505 = vmatprep.subr.mxu0 0.0
    %506 = vmatpush2.xpose.msra.mxu0 0.0
    %507 = vmatprep.subr.mxu0 0.0
    %508 = vmatpush2.xpose.msra.mxu0 0.0
    %509 = vmatprep.subr.mxu0 0.0
    %510 = vmatpush2.xpose.msra.mxu0 0.0
    %511 = vmatprep.subr.mxu0 0.0
    %512 = vmatpush2.xpose.msra.mxu0 0.0
    %513 = vmatprep.subr.mxu0 0.0
    %514 = vmatpush2.xpose.msra.mxu0 0.0
    %515 = vmatprep.subr.mxu0 0.0
    %516 = vmatpush2.xpose.msra.mxu0 0.0
    %517 = vmatprep.subr.mxu0 0.0
    %518 = vmatpush2.xpose.msra.mxu0 0.0
    %519 = vmatprep.mubr.f32.mxu0 0.0
    %520 = vmatmul.mubr.f32.gmra.mxu0 %v447
    %v521 = vpop.f32.mrf.mxu0
    %v522 = vadd.f32 %v241, %v521
    %v523 = vpop.f32.mrf.mxu0
    %524 = vmatprep.mubr.f32.mxu0 0.0
    %525 = vmatmul.mubr.f32.gmra.mxu0 %v449
    %v526 = vpop.f32.mrf.mxu0
    %v527 = vadd.f32 %v242, %v526
    %v528 = vpop.f32.mrf.mxu0
    %529 = vdwg.mxu0
    %v530 = vsel %vm335, %v522, -inf
    %531 = vmax.xlane.f32.xlu0 %v530
    %v532 = vpop.xlane.xlu0 %531
    %v533 = vsel %vm335, %v527, -inf
    %534 = vmax.xlane.f32.xlu0 %v533
    %v535 = vpop.xlane.xlu0 %534
    %v536 = vsub.f32 %v522, %v532
    %v537 = vsub.f32 %v527, %v535
    %v538 = vmul.f32 %v536, 1.442695
    %v539 = vpow.pop %v538
    %v540 = vmul.f32 %v537, 1.442695
    %v541 = vpow.pop %v540
    %v542 = vsel %vm335, %v539, 0.0
    %543 = vadd.xlane.f32.xlu0 %v542
    %v544 = vpop.xlane.xlu0 %543
    %v545 = vsel %vm335, %v541, 0.0
    %546 = vadd.xlane.f32.xlu0 %v545
    %v547 = vpop.xlane.xlu0 %546
    %v548 = vrcp.pop %v544
    %v549 = vrcp.pop %v547
    %v550 = vmul.f32 %v539, %v548
    %v551 = vmul.f32 %v541, %v549
    %554 = vrot.lane.b32.xlu0 %v179, 120
    %v555 = vpop.permute.xlu0 %554
    %556 = vrot.lane.b32.xlu0 %v185, 120
    %v557 = vpop.permute.xlu0 %556
    %v561 = vsel %vm335, %v550, 0
    %v564 = vsel %vm335, %v551, 0
    %566 = vmatprep.subr.mxu0 0.0
    %567 = vmatpush1.msra.mxu0 0.0
    %568 = vmatprep.subr.mxu0 0.0
    %569 = vmatpush1.msra.mxu0 0.0
    %570 = vmatprep.subr.mxu0 0.0
    %571 = vmatpush1.msra.mxu0 0.0
    %572 = vmatprep.subr.mxu0 0.0
    %573 = vmatpush1.msra.mxu0 0.0
    %574 = vmatprep.subr.mxu0 0.0
    %575 = vmatpush1.msra.mxu0 0.0
    %576 = vmatprep.subr.mxu0 0.0
    %577 = vmatpush1.msra.mxu0 0.0
    %578 = vmatprep.subr.mxu0 0.0
    %579 = vmatpush1.msra.mxu0 0.0
    %580 = vmatprep.subr.mxu0 0.0
    %581 = vmatpush1.msra.mxu0 0.0
    %582 = vmatprep.subr.mxu0 0.0
    %583 = vmatpush1.msra.mxu0 0.0
    %584 = vmatprep.subr.mxu0 0.0
    %585 = vmatpush1.msra.mxu0 0.0
    %586 = vmatprep.subr.mxu0 0.0
    %587 = vmatpush1.msra.mxu0 0.0
    %588 = vmatprep.subr.mxu0 0.0
    %589 = vmatpush1.msra.mxu0 0.0
    %590 = vmatprep.subr.mxu0 0.0
    %591 = vmatpush1.msra.mxu0 0.0
    %592 = vmatprep.subr.mxu0 0.0
    %593 = vmatpush1.msra.mxu0 0.0
    %594 = vmatprep.subr.mxu0 0.0
    %595 = vmatpush1.msra.mxu0 %v557
    %596 = vmatprep.subr.mxu0 0.0
    %597 = vmatpush1.msra.mxu0 %v555
    %598 = vmatprep.subr.mxu0 0.0
    %599 = vmatpush2.msra.mxu0 0.0
    %600 = vmatprep.subr.mxu0 0.0
    %601 = vmatpush2.msra.mxu0 0.0
    %602 = vmatprep.subr.mxu0 0.0
    %603 = vmatpush2.msra.mxu0 0.0
    %604 = vmatprep.subr.mxu0 0.0
    %605 = vmatpush2.msra.mxu0 0.0
    %606 = vmatprep.subr.mxu0 0.0
    %607 = vmatpush2.msra.mxu0 0.0
    %608 = vmatprep.subr.mxu0 0.0
    %609 = vmatpush2.msra.mxu0 0.0
    %610 = vmatprep.subr.mxu0 0.0
    %611 = vmatpush2.msra.mxu0 0.0
    %612 = vmatprep.subr.mxu0 0.0
    %613 = vmatpush2.msra.mxu0 0.0
    %614 = vmatprep.subr.mxu0 0.0
    %615 = vmatpush2.msra.mxu0 0.0
    %616 = vmatprep.subr.mxu0 0.0
    %617 = vmatpush2.msra.mxu0 0.0
    %618 = vmatprep.subr.mxu0 0.0
    %619 = vmatpush2.msra.mxu0 0.0
    %620 = vmatprep.subr.mxu0 0.0
    %621 = vmatpush2.msra.mxu0 0.0
    %622 = vmatprep.subr.mxu0 0.0
    %623 = vmatpush2.msra.mxu0 0.0
    %624 = vmatprep.subr.mxu0 0.0
    %625 = vmatpush2.msra.mxu0 0.0
    %626 = vmatprep.subr.mxu0 0.0
    %627 = vmatpush2.msra.mxu0 0.0
    %628 = vmatprep.subr.mxu0 0.0
    %629 = vmatpush2.msra.mxu0 0.0
    %630 = vmatprep.mubr.f32.mxu0 0.0
    %631 = vmatmul.mubr.f32.gmra.mxu0 %v561
    %v632 = vpop.f32.mrf.mxu0
    %v633 = vadd.f32 0.0, %v632
    %v634 = vpop.f32.mrf.mxu0
    %635 = vmatprep.mubr.f32.mxu0 0.0
    %636 = vmatmul.mubr.f32.gmra.mxu0 %v564
    %v637 = vpop.f32.mrf.mxu0
    %v638 = vadd.f32 0.0, %v637
    %v639 = vpop.f32.mrf.mxu0
    %640 = vdwg.mxu0
    %641 = vrot.lane.b32.xlu0 %v211, 112
    %v642 = vpop.permute.xlu0 %641
    %643 = vrot.lane.b32.xlu0 %v212, 112
    %v644 = vpop.permute.xlu0 %643
    %645 = vrot.lane.b32.xlu0 %v239, 48
    %v646 = vpop.permute.xlu0 %645
    %647 = vrot.lane.b32.xlu0 %v240, 48
    %v648 = vpop.permute.xlu0 %647
    %v649 = vsel %vm249, %v642, 0
    %v651 = vsel %vm249, %v644, 0
    %v653 = vsel %vm249, %v646, 0
    %v655 = vsel %vm249, %v648, 0
    %657 = vmatprep.subr.mxu0 0.0
    %658 = vmatpush1.xpose.msra.mxu0 0.0
    %659 = vmatprep.subr.mxu0 0.0
    %660 = vmatpush1.xpose.msra.mxu0 0.0
    %661 = vmatprep.subr.mxu0 0.0
    %662 = vmatpush1.xpose.msra.mxu0 0.0
    %663 = vmatprep.subr.mxu0 0.0
    %664 = vmatpush1.xpose.msra.mxu0 0.0
    %665 = vmatprep.subr.mxu0 0.0
    %666 = vmatpush1.xpose.msra.mxu0 0.0
    %667 = vmatprep.subr.mxu0 0.0
    %668 = vmatpush1.xpose.msra.mxu0 0.0
    %669 = vmatprep.subr.mxu0 0.0
    %670 = vmatpush1.xpose.msra.mxu0 0.0
    %671 = vmatprep.subr.mxu0 0.0
    %672 = vmatpush1.xpose.msra.mxu0 0.0
    %673 = vmatprep.subr.mxu0 0.0
    %674 = vmatpush1.xpose.msra.mxu0 0.0
    %675 = vmatprep.subr.mxu0 0.0
    %676 = vmatpush1.xpose.msra.mxu0 0.0
    %677 = vmatprep.subr.mxu0 0.0
    %678 = vmatpush1.xpose.msra.mxu0 0.0
    %679 = vmatprep.subr.mxu0 0.0
    %680 = vmatpush1.xpose.msra.mxu0 0.0
    %681 = vmatprep.subr.mxu0 0.0
    %682 = vmatpush1.xpose.msra.mxu0 0.0
    %683 = vmatprep.subr.mxu0 0.0
    %684 = vmatpush1.xpose.msra.mxu0 0.0
    %685 = vmatprep.subr.mxu0 0.0
    %686 = vmatpush1.xpose.msra.mxu0 %v655
    %687 = vmatprep.subr.mxu0 0.0
    %688 = vmatpush1.xpose.msra.mxu0 %v653
    %689 = vmatprep.subr.mxu0 0.0
    %690 = vmatpush2.xpose.msra.mxu0 0.0
    %691 = vmatprep.subr.mxu0 0.0
    %692 = vmatpush2.xpose.msra.mxu0 0.0
    %693 = vmatprep.subr.mxu0 0.0
    %694 = vmatpush2.xpose.msra.mxu0 0.0
    %695 = vmatprep.subr.mxu0 0.0
    %696 = vmatpush2.xpose.msra.mxu0 0.0
    %697 = vmatprep.subr.mxu0 0.0
    %698 = vmatpush2.xpose.msra.mxu0 0.0
    %699 = vmatprep.subr.mxu0 0.0
    %700 = vmatpush2.xpose.msra.mxu0 0.0
    %701 = vmatprep.subr.mxu0 0.0
    %702 = vmatpush2.xpose.msra.mxu0 0.0
    %703 = vmatprep.subr.mxu0 0.0
    %704 = vmatpush2.xpose.msra.mxu0 0.0
    %705 = vmatprep.subr.mxu0 0.0
    %706 = vmatpush2.xpose.msra.mxu0 0.0
    %707 = vmatprep.subr.mxu0 0.0
    %708 = vmatpush2.xpose.msra.mxu0 0.0
    %709 = vmatprep.subr.mxu0 0.0
    %710 = vmatpush2.xpose.msra.mxu0 0.0
    %711 = vmatprep.subr.mxu0 0.0
    %712 = vmatpush2.xpose.msra.mxu0 0.0
    %713 = vmatprep.subr.mxu0 0.0
    %714 = vmatpush2.xpose.msra.mxu0 0.0
    %715 = vmatprep.subr.mxu0 0.0
    %716 = vmatpush2.xpose.msra.mxu0 0.0
    %717 = vmatprep.subr.mxu0 0.0
    %718 = vmatpush2.xpose.msra.mxu0 0.0
    %719 = vmatprep.subr.mxu0 0.0
    %720 = vmatpush2.xpose.msra.mxu0 0.0
    %721 = vmatprep.mubr.f32.mxu0 0.0
    %722 = vmatmul.mubr.f32.gmra.mxu0 %v649
    %v723 = vpop.f32.mrf.mxu0
    %v724 = vadd.f32 %v241, %v723
    %v725 = vpop.f32.mrf.mxu0
    %726 = vmatprep.mubr.f32.mxu0 0.0
    %727 = vmatmul.mubr.f32.gmra.mxu0 %v651
    %v728 = vpop.f32.mrf.mxu0
    %v729 = vadd.f32 %v242, %v728
    %v730 = vpop.f32.mrf.mxu0
    %731 = vdwg.mxu0
    %v732 = vsel %vm335, %v724, -inf
    %733 = vmax.xlane.f32.xlu0 %v732
    %v734 = vpop.xlane.xlu0 %733
    %v735 = vsel %vm335, %v729, -inf
    %736 = vmax.xlane.f32.xlu0 %v735
    %v737 = vpop.xlane.xlu0 %736
    %v738 = vsub.f32 %v724, %v734
    %v739 = vsub.f32 %v729, %v737
    %v740 = vmul.f32 %v738, 1.442695
    %v741 = vpow.pop %v740
    %v742 = vmul.f32 %v739, 1.442695
    %v743 = vpow.pop %v742
    %v744 = vsel %vm335, %v741, 0.0
    %745 = vadd.xlane.f32.xlu0 %v744
    %v746 = vpop.xlane.xlu0 %745
    %v747 = vsel %vm335, %v743, 0.0
    %748 = vadd.xlane.f32.xlu0 %v747
    %v749 = vpop.xlane.xlu0 %748
    %v750 = vrcp.pop %v746
    %v751 = vrcp.pop %v749
    %v752 = vmul.f32 %v741, %v750
    %v753 = vmul.f32 %v743, %v751
    %754 = vrot.lane.b32.xlu0 %v179, 112
    %v755 = vpop.permute.xlu0 %754
    %756 = vrot.lane.b32.xlu0 %v185, 112
    %v757 = vpop.permute.xlu0 %756
    %v761 = vsel %vm335, %v752, 0
    %v764 = vsel %vm335, %v753, 0
    %766 = vmatprep.subr.mxu0 0.0
    %767 = vmatpush1.msra.mxu0 0.0
    %768 = vmatprep.subr.mxu0 0.0
    %769 = vmatpush1.msra.mxu0 0.0
    %770 = vmatprep.subr.mxu0 0.0
    %771 = vmatpush1.msra.mxu0 0.0
    %772 = vmatprep.subr.mxu0 0.0
    %773 = vmatpush1.msra.mxu0 0.0
    %774 = vmatprep.subr.mxu0 0.0
    %775 = vmatpush1.msra.mxu0 0.0
    %776 = vmatprep.subr.mxu0 0.0
    %777 = vmatpush1.msra.mxu0 0.0
    %778 = vmatprep.subr.mxu0 0.0
    %779 = vmatpush1.msra.mxu0 0.0
    %780 = vmatprep.subr.mxu0 0.0
    %781 = vmatpush1.msra.mxu0 0.0
    %782 = vmatprep.subr.mxu0 0.0
    %783 = vmatpush1.msra.mxu0 0.0
    %784 = vmatprep.subr.mxu0 0.0
    %785 = vmatpush1.msra.mxu0 0.0
    %786 = vmatprep.subr.mxu0 0.0
    %787 = vmatpush1.msra.mxu0 0.0
    %788 = vmatprep.subr.mxu0 0.0
    %789 = vmatpush1.msra.mxu0 0.0
    %790 = vmatprep.subr.mxu0 0.0
    %791 = vmatpush1.msra.mxu0 0.0
    %792 = vmatprep.subr.mxu0 0.0
    %793 = vmatpush1.msra.mxu0 0.0
    %794 = vmatprep.subr.mxu0 0.0
    %795 = vmatpush1.msra.mxu0 %v757
    %796 = vmatprep.subr.mxu0 0.0
    %797 = vmatpush1.msra.mxu0 %v755
    %798 = vmatprep.subr.mxu0 0.0
    %799 = vmatpush2.msra.mxu0 0.0
    %800 = vmatprep.subr.mxu0 0.0
    %801 = vmatpush2.msra.mxu0 0.0
    %802 = vmatprep.subr.mxu0 0.0
    %803 = vmatpush2.msra.mxu0 0.0
    %804 = vmatprep.subr.mxu0 0.0
    %805 = vmatpush2.msra.mxu0 0.0
    %806 = vmatprep.subr.mxu0 0.0
    %807 = vmatpush2.msra.mxu0 0.0
    %808 = vmatprep.subr.mxu0 0.0
    %809 = vmatpush2.msra.mxu0 0.0
    %810 = vmatprep.subr.mxu0 0.0
    %811 = vmatpush2.msra.mxu0 0.0
    %812 = vmatprep.subr.mxu0 0.0
    %813 = vmatpush2.msra.mxu0 0.0
    %814 = vmatprep.subr.mxu0 0.0
    %815 = vmatpush2.msra.mxu0 0.0
    %816 = vmatprep.subr.mxu0 0.0
    %817 = vmatpush2.msra.mxu0 0.0
    %818 = vmatprep.subr.mxu0 0.0
    %819 = vmatpush2.msra.mxu0 0.0
    %820 = vmatprep.subr.mxu0 0.0
    %821 = vmatpush2.msra.mxu0 0.0
    %822 = vmatprep.subr.mxu0 0.0
    %823 = vmatpush2.msra.mxu0 0.0
    %824 = vmatprep.subr.mxu0 0.0
    %825 = vmatpush2.msra.mxu0 0.0
    %826 = vmatprep.subr.mxu0 0.0
    %827 = vmatpush2.msra.mxu0 0.0
    %828 = vmatprep.subr.mxu0 0.0
    %829 = vmatpush2.msra.mxu0 0.0
    %830 = vmatprep.mubr.f32.mxu0 0.0
    %831 = vmatmul.mubr.f32.gmra.mxu0 %v761
    %v832 = vpop.f32.mrf.mxu0
    %v833 = vadd.f32 0.0, %v832
    %v834 = vpop.f32.mrf.mxu0
    %835 = vmatprep.mubr.f32.mxu0 0.0
    %836 = vmatmul.mubr.f32.gmra.mxu0 %v764
    %v837 = vpop.f32.mrf.mxu0
    %v838 = vadd.f32 0.0, %v837
    %v839 = vpop.f32.mrf.mxu0
    %840 = vdwg.mxu0
    %841 = vrot.lane.b32.xlu0 %v211, 104
    %v842 = vpop.permute.xlu0 %841
    %843 = vrot.lane.b32.xlu0 %v212, 104
    %v844 = vpop.permute.xlu0 %843
    %845 = vrot.lane.b32.xlu0 %v239, 40
    %v846 = vpop.permute.xlu0 %845
    %847 = vrot.lane.b32.xlu0 %v240, 40
    %v848 = vpop.permute.xlu0 %847
    %v849 = vsel %vm249, %v842, 0
    %v851 = vsel %vm249, %v844, 0
    %v853 = vsel %vm249, %v846, 0
    %v855 = vsel %vm249, %v848, 0
    %857 = vmatprep.subr.mxu0 0.0
    %858 = vmatpush1.xpose.msra.mxu0 0.0
    %859 = vmatprep.subr.mxu0 0.0
    %860 = vmatpush1.xpose.msra.mxu0 0.0
    %861 = vmatprep.subr.mxu0 0.0
    %862 = vmatpush1.xpose.msra.mxu0 0.0
    %863 = vmatprep.subr.mxu0 0.0
    %864 = vmatpush1.xpose.msra.mxu0 0.0
    %865 = vmatprep.subr.mxu0 0.0
    %866 = vmatpush1.xpose.msra.mxu0 0.0
    %867 = vmatprep.subr.mxu0 0.0
    %868 = vmatpush1.xpose.msra.mxu0 0.0
    %869 = vmatprep.subr.mxu0 0.0
    %870 = vmatpush1.xpose.msra.mxu0 0.0
    %871 = vmatprep.subr.mxu0 0.0
    %872 = vmatpush1.xpose.msra.mxu0 0.0
    %873 = vmatprep.subr.mxu0 0.0
    %874 = vmatpush1.xpose.msra.mxu0 0.0
    %875 = vmatprep.subr.mxu0 0.0
    %876 = vmatpush1.xpose.msra.mxu0 0.0
    %877 = vmatprep.subr.mxu0 0.0
    %878 = vmatpush1.xpose.msra.mxu0 0.0
    %879 = vmatprep.subr.mxu0 0.0
    %880 = vmatpush1.xpose.msra.mxu0 0.0
    %881 = vmatprep.subr.mxu0 0.0
    %882 = vmatpush1.xpose.msra.mxu0 0.0
    %883 = vmatprep.subr.mxu0 0.0
    %884 = vmatpush1.xpose.msra.mxu0 0.0
    %885 = vmatprep.subr.mxu0 0.0
    %886 = vmatpush1.xpose.msra.mxu0 %v855
    %887 = vmatprep.subr.mxu0 0.0
    %888 = vmatpush1.xpose.msra.mxu0 %v853
    %889 = vmatprep.subr.mxu0 0.0
    %890 = vmatpush2.xpose.msra.mxu0 0.0
    %891 = vmatprep.subr.mxu0 0.0
    %892 = vmatpush2.xpose.msra.mxu0 0.0
    %893 = vmatprep.subr.mxu0 0.0
    %894 = vmatpush2.xpose.msra.mxu0 0.0
    %895 = vmatprep.subr.mxu0 0.0
    %896 = vmatpush2.xpose.msra.mxu0 0.0
    %897 = vmatprep.subr.mxu0 0.0
    %898 = vmatpush2.xpose.msra.mxu0 0.0
    %899 = vmatprep.subr.mxu0 0.0
    %900 = vmatpush2.xpose.msra.mxu0 0.0
    %901 = vmatprep.subr.mxu0 0.0
    %902 = vmatpush2.xpose.msra.mxu0 0.0
    %903 = vmatprep.subr.mxu0 0.0
    %904 = vmatpush2.xpose.msra.mxu0 0.0
    %905 = vmatprep.subr.mxu0 0.0
    %906 = vmatpush2.xpose.msra.mxu0 0.0
    %907 = vmatprep.subr.mxu0 0.0
    %908 = vmatpush2.xpose.msra.mxu0 0.0
    %909 = vmatprep.subr.mxu0 0.0
    %910 = vmatpush2.xpose.msra.mxu0 0.0
    %911 = vmatprep.subr.mxu0 0.0
    %912 = vmatpush2.xpose.msra.mxu0 0.0
    %913 = vmatprep.subr.mxu0 0.0
    %914 = vmatpush2.xpose.msra.mxu0 0.0
    %915 = vmatprep.subr.mxu0 0.0
    %916 = vmatpush2.xpose.msra.mxu0 0.0
    %917 = vmatprep.subr.mxu0 0.0
    %918 = vmatpush2.xpose.msra.mxu0 0.0
    %919 = vmatprep.subr.mxu0 0.0
    %920 = vmatpush2.xpose.msra.mxu0 0.0
    %921 = vmatprep.mubr.f32.mxu0 0.0
    %922 = vmatmul.mubr.f32.gmra.mxu0 %v849
    %v923 = vpop.f32.mrf.mxu0
    %v924 = vadd.f32 %v241, %v923
    %v925 = vpop.f32.mrf.mxu0
    %926 = vmatprep.mubr.f32.mxu0 0.0
    %927 = vmatmul.mubr.f32.gmra.mxu0 %v851
    %v928 = vpop.f32.mrf.mxu0
    %v929 = vadd.f32 %v242, %v928
    %v930 = vpop.f32.mrf.mxu0
    %931 = vdwg.mxu0
    %v932 = vsel %vm335, %v924, -inf
    %933 = vmax.xlane.f32.xlu0 %v932
    %v934 = vpop.xlane.xlu0 %933
    %v935 = vsel %vm335, %v929, -inf
    %936 = vmax.xlane.f32.xlu0 %v935
    %v937 = vpop.xlane.xlu0 %936
    %v938 = vsub.f32 %v924, %v934
    %v939 = vsub.f32 %v929, %v937
    %v940 = vmul.f32 %v938, 1.442695
    %v941 = vpow.pop %v940
    %v942 = vmul.f32 %v939, 1.442695
    %v943 = vpow.pop %v942
    %v944 = vsel %vm335, %v941, 0.0
    %945 = vadd.xlane.f32.xlu0 %v944
    %v946 = vpop.xlane.xlu0 %945
    %v947 = vsel %vm335, %v943, 0.0
    %948 = vadd.xlane.f32.xlu0 %v947
    %v949 = vpop.xlane.xlu0 %948
    %v950 = vrcp.pop %v946
    %v951 = vrcp.pop %v949
    %v952 = vmul.f32 %v941, %v950
    %v953 = vmul.f32 %v943, %v951
    %954 = vrot.lane.b32.xlu0 %v179, 104
    %v955 = vpop.permute.xlu0 %954
    %956 = vrot.lane.b32.xlu0 %v185, 104
    %v957 = vpop.permute.xlu0 %956
    %v961 = vsel %vm335, %v952, 0
    %v964 = vsel %vm335, %v953, 0
    %966 = vmatprep.subr.mxu0 0.0
    %967 = vmatpush1.msra.mxu0 0.0
    %968 = vmatprep.subr.mxu0 0.0
    %969 = vmatpush1.msra.mxu0 0.0
    %970 = vmatprep.subr.mxu0 0.0
    %971 = vmatpush1.msra.mxu0 0.0
    %972 = vmatprep.subr.mxu0 0.0
    %973 = vmatpush1.msra.mxu0 0.0
    %974 = vmatprep.subr.mxu0 0.0
    %975 = vmatpush1.msra.mxu0 0.0
    %976 = vmatprep.subr.mxu0 0.0
    %977 = vmatpush1.msra.mxu0 0.0
    %978 = vmatprep.subr.mxu0 0.0
    %979 = vmatpush1.msra.mxu0 0.0
    %980 = vmatprep.subr.mxu0 0.0
    %981 = vmatpush1.msra.mxu0 0.0
    %982 = vmatprep.subr.mxu0 0.0
    %983 = vmatpush1.msra.mxu0 0.0
    %984 = vmatprep.subr.mxu0 0.0
    %985 = vmatpush1.msra.mxu0 0.0
    %986 = vmatprep.subr.mxu0 0.0
    %987 = vmatpush1.msra.mxu0 0.0
    %988 = vmatprep.subr.mxu0 0.0
    %989 = vmatpush1.msra.mxu0 0.0
    %990 = vmatprep.subr.mxu0 0.0
    %991 = vmatpush1.msra.mxu0 0.0
    %992 = vmatprep.subr.mxu0 0.0
    %993 = vmatpush1.msra.mxu0 0.0
    %994 = vmatprep.subr.mxu0 0.0
    %995 = vmatpush1.msra.mxu0 %v957
    %996 = vmatprep.subr.mxu0 0.0
    %997 = vmatpush1.msra.mxu0 %v955
    %998 = vmatprep.subr.mxu0 0.0
    %999 = vmatpush2.msra.mxu0 0.0
    %1000 = vmatprep.subr.mxu0 0.0
    %1001 = vmatpush2.msra.mxu0 0.0
    %1002 = vmatprep.subr.mxu0 0.0
    %1003 = vmatpush2.msra.mxu0 0.0
    %1004 = vmatprep.subr.mxu0 0.0
    %1005 = vmatpush2.msra.mxu0 0.0
    %1006 = vmatprep.subr.mxu0 0.0
    %1007 = vmatpush2.msra.mxu0 0.0
    %1008 = vmatprep.subr.mxu0 0.0
    %1009 = vmatpush2.msra.mxu0 0.0
    %1010 = vmatprep.subr.mxu0 0.0
    %1011 = vmatpush2.msra.mxu0 0.0
    %1012 = vmatprep.subr.mxu0 0.0
    %1013 = vmatpush2.msra.mxu0 0.0
    %1014 = vmatprep.subr.mxu0 0.0
    %1015 = vmatpush2.msra.mxu0 0.0
    %1016 = vmatprep.subr.mxu0 0.0
    %1017 = vmatpush2.msra.mxu0 0.0
    %1018 = vmatprep.subr.mxu0 0.0
    %1019 = vmatpush2.msra.mxu0 0.0
    %1020 = vmatprep.subr.mxu0 0.0
    %1021 = vmatpush2.msra.mxu0 0.0
    %1022 = vmatprep.subr.mxu0 0.0
    %1023 = vmatpush2.msra.mxu0 0.0
    %1024 = vmatprep.subr.mxu0 0.0
    %1025 = vmatpush2.msra.mxu0 0.0
    %1026 = vmatprep.subr.mxu0 0.0
    %1027 = vmatpush2.msra.mxu0 0.0
    %1028 = vmatprep.subr.mxu0 0.0
    %1029 = vmatpush2.msra.mxu0 0.0
    %1030 = vmatprep.mubr.f32.mxu0 0.0
    %1031 = vmatmul.mubr.f32.gmra.mxu0 %v961
    %v1032 = vpop.f32.mrf.mxu0
    %v1033 = vadd.f32 0.0, %v1032
    %v1034 = vpop.f32.mrf.mxu0
    %1035 = vmatprep.mubr.f32.mxu0 0.0
    %1036 = vmatmul.mubr.f32.gmra.mxu0 %v964
    %v1037 = vpop.f32.mrf.mxu0
    %v1038 = vadd.f32 0.0, %v1037
    %v1039 = vpop.f32.mrf.mxu0
    %1040 = vdwg.mxu0
    %1043 = vrot.lane.b32.xlu0 %v633, 8
    %v1044 = vpop.permute.xlu0 %1043
    %1045 = vrot.lane.b32.xlu0 %v638, 8
    %v1046 = vpop.permute.xlu0 %1045
    %1051 = vrot.lane.b32.xlu0 %v833, 16
    %v1052 = vpop.permute.xlu0 %1051
    %1053 = vrot.lane.b32.xlu0 %v838, 16
    %v1054 = vpop.permute.xlu0 %1053
    %1059 = vrot.lane.b32.xlu0 %v1033, 24
    %v1060 = vpop.permute.xlu0 %1059
    %1061 = vrot.lane.b32.xlu0 %v1038, 24
    %v1062 = vpop.permute.xlu0 %1061
    %v1065 = vsel %vm249, %v431, %v1044
    %v1066 = vsel %vm249, %v436, %v1046
    %v1067 = vsel %vm335, %v1065, %v1052
    %v1068 = vsel %vm335, %v1066, %v1054
    %vm1069 = vcmask 195584
    %v1070 = vsel %vm1069, %v1067, %v1060
    %v1071 = vsel %vm1069, %v1068, %v1062
    %v1072 = vld [vmem:[%s7] sm:$0xff]
    %v1073 = vld [vmem:[%s7 + $0x8] sm:$0xff]
    %v1074 = vld [vmem:[%s7 + $0x10] sm:$0xff]
    %v1075 = vld [vmem:[%s7 + $0x18] sm:$0xff]
    %v1077 = vsel %vm50, %v1070, 0
    %v1080 = vsel %vm50, %v1071, 0
    %1082 = vmatprep.subr.mxu0 0.0
    %1083 = vmatpush1.msra.mxu0 0.0
    %1084 = vmatprep.subr.mxu0 0.0
    %1085 = vmatpush1.msra.mxu0 0.0
    %1086 = vmatprep.subr.mxu0 0.0
    %1087 = vmatpush1.msra.mxu0 0.0
    %1088 = vmatprep.subr.mxu0 0.0
    %1089 = vmatpush1.msra.mxu0 0.0
    %1090 = vmatprep.subr.mxu0 0.0
    %1091 = vmatpush1.msra.mxu0 0.0
    %1092 = vmatprep.subr.mxu0 0.0
    %1093 = vmatpush1.msra.mxu0 0.0
    %1094 = vmatprep.subr.mxu0 0.0
    %1095 = vmatpush1.msra.mxu0 0.0
    %1096 = vmatprep.subr.mxu0 0.0
    %1097 = vmatpush1.msra.mxu0 0.0
    %1098 = vmatprep.subr.mxu0 0.0
    %1099 = vmatpush1.msra.mxu0 0.0
    %1100 = vmatprep.subr.mxu0 0.0
    %1101 = vmatpush1.msra.mxu0 0.0
    %1102 = vmatprep.subr.mxu0 0.0
    %1103 = vmatpush1.msra.mxu0 0.0
    %1104 = vmatprep.subr.mxu0 0.0
    %1105 = vmatpush1.msra.mxu0 0.0
    %1106 = vmatprep.subr.mxu0 0.0
    %1107 = vmatpush1.msra.mxu0 %v1075
    %1108 = vmatprep.subr.mxu0 0.0
    %1109 = vmatpush1.msra.mxu0 %v1074
    %1110 = vmatprep.subr.mxu0 0.0
    %1111 = vmatpush1.msra.mxu0 %v1073
    %1112 = vmatprep.subr.mxu0 0.0
    %1113 = vmatpush1.msra.mxu0 %v1072
    %1114 = vmatprep.subr.mxu0 0.0
    %1115 = vmatpush2.msra.mxu0 0.0
    %1116 = vmatprep.subr.mxu0 0.0
    %1117 = vmatpush2.msra.mxu0 0.0
    %1118 = vmatprep.subr.mxu0 0.0
    %1119 = vmatpush2.msra.mxu0 0.0
    %1120 = vmatprep.subr.mxu0 0.0
    %1121 = vmatpush2.msra.mxu0 0.0
    %1122 = vmatprep.subr.mxu0 0.0
    %1123 = vmatpush2.msra.mxu0 0.0
    %1124 = vmatprep.subr.mxu0 0.0
    %1125 = vmatpush2.msra.mxu0 0.0
    %1126 = vmatprep.subr.mxu0 0.0
    %1127 = vmatpush2.msra.mxu0 0.0
    %1128 = vmatprep.subr.mxu0 0.0
    %1129 = vmatpush2.msra.mxu0 0.0
    %1130 = vmatprep.subr.mxu0 0.0
    %1131 = vmatpush2.msra.mxu0 0.0
    %1132 = vmatprep.subr.mxu0 0.0
    %1133 = vmatpush2.msra.mxu0 0.0
    %1134 = vmatprep.subr.mxu0 0.0
    %1135 = vmatpush2.msra.mxu0 0.0
    %1136 = vmatprep.subr.mxu0 0.0
    %1137 = vmatpush2.msra.mxu0 0.0
    %1138 = vmatprep.subr.mxu0 0.0
    %1139 = vmatpush2.msra.mxu0 0.0
    %1140 = vmatprep.subr.mxu0 0.0
    %1141 = vmatpush2.msra.mxu0 0.0
    %1142 = vmatprep.subr.mxu0 0.0
    %1143 = vmatpush2.msra.mxu0 0.0
    %1144 = vmatprep.subr.mxu0 0.0
    %1145 = vmatpush2.msra.mxu0 0.0
    %1146 = vmatprep.mubr.f32.mxu0 0.0
    %1147 = vmatmul.mubr.f32.gmra.mxu0 %v1077
    %v1148 = vpop.f32.mrf.mxu0
    %v1149 = vadd.f32 0.0, %v1148
    %v1150 = vpop.f32.mrf.mxu0
    %1151 = vmatprep.mubr.f32.mxu0 0.0
    %1152 = vmatmul.mubr.f32.gmra.mxu0 %v1080
    %v1153 = vpop.f32.mrf.mxu0
    %v1154 = vadd.f32 0.0, %v1153
    %v1155 = vpop.f32.mrf.mxu0
    %1156 = vdwg.mxu0
    %v1157 = vadd.f32 %v94, %v1149
    %v1158 = vadd.f32 %v95, %v1154
    %1160 = vrot.lane.b32.xlu0 %v1158, 32
    %v1161 = vpop.permute.xlu0 %1160
    %v1163 = vsel %vm50, %v1157, %v1161
    %vm1164 = vcmask 523264
    %v1165 = vsel %vm1164, %v1163, 0.0
    %1166 = vadd.xlane.f32.xlu0 %v1165
    %v1167 = vpop.xlane.xlu0 %1166
    %v1168 = vrcp.pop 64.0
    %v1169 = vmul.f32 %v1167, %v1168
    %v1170 = vsub.f32 %v1163, %v1169
    %v1171 = vmul.f32 %v1170, %v1170
    %v1172 = vsel %vm1164, %v1171, 0.0
    %1173 = vadd.xlane.f32.xlu0 %v1172
    %v1174 = vpop.xlane.xlu0 %1173
    %v1175 = vmul.f32 %v1174, %v1168
    %v1176 = vadd.f32 %v1175, 1e-05
    %v1177 = vrsqrt.pop %v1176
    %v1178 = vmul.f32 %v1170, %v1177
    %v1179 = vld [vmem:[%s8] sm:$0x1]
    %v1181 = vlaneseq
    %v1182 = vshrl.u32 %v1181, 7
    %v1183 = vsub.s32 0, %v1182
    %v1184 = vrot.slane %v1179, %v1183
    %v1186 = vmul.f32 %v1178, %v1184
    %v1187 = vld [vmem:[%s9] sm:$0x1]
    %v1189 = vlaneseq
    %v1190 = vshrl.u32 %v1189, 7
    %v1191 = vsub.s32 0, %v1190
    %v1192 = vrot.slane %v1187, %v1191
    %v1194 = vadd.f32 %v1186, %v1192
    %v1195 = vld [vmem:[%s10] sm:$0xff]
    %v1196 = vld [vmem:[%s10 + $0x8] sm:$0xff]
    %v1197 = vld [vmem:[%s10 + $0x10] sm:$0xff]
    %v1198 = vld [vmem:[%s10 + $0x18] sm:$0xff]
    %v1199 = vld [vmem:[%s10 + $0x20] sm:$0xff]
    %v1200 = vld [vmem:[%s10 + $0x28] sm:$0xff]
    %v1201 = vld [vmem:[%s10 + $0x30] sm:$0xff]
    %v1202 = vld [vmem:[%s10 + $0x38] sm:$0xff]
    %v1203 = vld [vmem:[%s11] sm:$0xff]
    %v1204 = vld [vmem:[%s11 + $0x8] sm:$0xff]
    %v1205 = vld [vmem:[%s11 + $0x10] sm:$0xff]
    %v1206 = vld [vmem:[%s11 + $0x18] sm:$0xff]
    %v1207 = vld [vmem:[%s11 + $0x20] sm:$0xff]
    %v1208 = vld [vmem:[%s11 + $0x28] sm:$0xff]
    %v1209 = vld [vmem:[%s11 + $0x30] sm:$0xff]
    %v1210 = vld [vmem:[%s11 + $0x38] sm:$0xff]
    %v1211 = vld [vmem:[%s11 + $0x40] sm:$0xff]
    %v1212 = vld [vmem:[%s11 + $0x48] sm:$0xff]
    %v1213 = vld [vmem:[%s11 + $0x50] sm:$0xff]
    %v1214 = vld [vmem:[%s11 + $0x58] sm:$0xff]
    %v1215 = vld [vmem:[%s11 + $0x60] sm:$0xff]
    %v1216 = vld [vmem:[%s11 + $0x68] sm:$0xff]
    %v1217 = vld [vmem:[%s11 + $0x70] sm:$0xff]
    %v1218 = vld [vmem:[%s11 + $0x78] sm:$0xff]
    %v1219 = vld [vmem:[%s11 + $0x80] sm:$0xff]
    %v1220 = vld [vmem:[%s11 + $0x88] sm:$0xff]
    %v1221 = vld [vmem:[%s11 + $0x90] sm:$0xff]
    %v1222 = vld [vmem:[%s11 + $0x98] sm:$0xff]
    %v1223 = vld [vmem:[%s11 + $0xa0] sm:$0xff]
    %v1224 = vld [vmem:[%s11 + $0xa8] sm:$0xff]
    %v1225 = vld [vmem:[%s11 + $0xb0] sm:$0xff]
    %v1226 = vld [vmem:[%s11 + $0xb8] sm:$0xff]
    %v1227 = vld [vmem:[%s11 + $0xc0] sm:$0xff]
    %v1228 = vld [vmem:[%s11 + $0xc8] sm:$0xff]
    %v1229 = vld [vmem:[%s11 + $0xd0] sm:$0xff]
    %v1230 = vld [vmem:[%s11 + $0xd8] sm:$0xff]
    %v1231 = vld [vmem:[%s11 + $0xe0] sm:$0xff]
    %v1232 = vld [vmem:[%s11 + $0xe8] sm:$0xff]
    %v1233 = vld [vmem:[%s11 + $0xf0] sm:$0xff]
    %v1234 = vld [vmem:[%s11 + $0xf8] sm:$0xff]
    %v1236 = vsel %vm1164, %v1194, 0
    %1238 = vmatprep.subr.mxu0 0.0
    %1239 = vmatpush1.msra.mxu0 0.0
    %1240 = vmatprep.subr.mxu0 0.0
    %1241 = vmatpush1.msra.mxu0 0.0
    %1242 = vmatprep.subr.mxu0 0.0
    %1243 = vmatpush1.msra.mxu0 0.0
    %1244 = vmatprep.subr.mxu0 0.0
    %1245 = vmatpush1.msra.mxu0 0.0
    %1246 = vmatprep.subr.mxu0 0.0
    %1247 = vmatpush1.msra.mxu0 0.0
    %1248 = vmatprep.subr.mxu0 0.0
    %1249 = vmatpush1.msra.mxu0 0.0
    %1250 = vmatprep.subr.mxu0 0.0
    %1251 = vmatpush1.msra.mxu0 0.0
    %1252 = vmatprep.subr.mxu0 0.0
    %1253 = vmatpush1.msra.mxu0 0.0
    %1254 = vmatprep.subr.mxu0 %v1232
    %1255 = vmatpush1.msra.mxu0 %v1231
    %1256 = vmatprep.subr.mxu0 %v1228
    %1257 = vmatpush1.msra.mxu0 %v1227
    %1258 = vmatprep.subr.mxu0 %v1224
    %1259 = vmatpush1.msra.mxu0 %v1223
    %1260 = vmatprep.subr.mxu0 %v1220
    %1261 = vmatpush1.msra.mxu0 %v1219
    %1262 = vmatprep.subr.mxu0 %v1216
    %1263 = vmatpush1.msra.mxu0 %v1215
    %1264 = vmatprep.subr.mxu0 %v1212
    %1265 = vmatpush1.msra.mxu0 %v1211
    %1266 = vmatprep.subr.mxu0 %v1208
    %1267 = vmatpush1.msra.mxu0 %v1207
    %1268 = vmatprep.subr.mxu0 %v1204
    %1269 = vmatpush1.msra.mxu0 %v1203
    %1270 = vmatprep.subr.mxu0 0.0
    %1271 = vmatpush2.msra.mxu0 0.0
    %1272 = vmatprep.subr.mxu0 0.0
    %1273 = vmatpush2.msra.mxu0 0.0
    %1274 = vmatprep.subr.mxu0 0.0
    %1275 = vmatpush2.msra.mxu0 0.0
    %1276 = vmatprep.subr.mxu0 0.0
    %1277 = vmatpush2.msra.mxu0 0.0
    %1278 = vmatprep.subr.mxu0 0.0
    %1279 = vmatpush2.msra.mxu0 0.0
    %1280 = vmatprep.subr.mxu0 0.0
    %1281 = vmatpush2.msra.mxu0 0.0
    %1282 = vmatprep.subr.mxu0 0.0
    %1283 = vmatpush2.msra.mxu0 0.0
    %1284 = vmatprep.subr.mxu0 0.0
    %1285 = vmatpush2.msra.mxu0 0.0
    %1286 = vmatprep.subr.mxu0 0.0
    %1287 = vmatpush2.msra.mxu0 0.0
    %1288 = vmatprep.subr.mxu0 0.0
    %1289 = vmatpush2.msra.mxu0 0.0
    %1290 = vmatprep.subr.mxu0 0.0
    %1291 = vmatpush2.msra.mxu0 0.0
    %1292 = vmatprep.subr.mxu0 0.0
    %1293 = vmatpush2.msra.mxu0 0.0
    %1294 = vmatprep.subr.mxu0 0.0
    %1295 = vmatpush2.msra.mxu0 0.0
    %1296 = vmatprep.subr.mxu0 0.0
    %1297 = vmatpush2.msra.mxu0 0.0
    %1298 = vmatprep.subr.mxu0 0.0
    %1299 = vmatpush2.msra.mxu0 0.0
    %1300 = vmatprep.subr.mxu0 0.0
    %1301 = vmatpush2.msra.mxu0 0.0
    %1302 = vmatprep.mubr.f32.mxu0 0.0
    %1303 = vmatmul.mubr.f32.gmra.mxu0 %v1236
    %v1304 = vpop.f32.mrf.mxu0
    %v1305 = vadd.f32 0.0, %v1304
    %v1306 = vpop.f32.mrf.mxu0
    %v1307 = vadd.f32 0.0, %v1306
    %1308 = vdwg.mxu0
    %1309 = vmatprep.subr.mxu0 0.0
    %1310 = vmatpush1.msra.mxu0 0.0
    %1311 = vmatprep.subr.mxu0 0.0
    %1312 = vmatpush1.msra.mxu0 0.0
    %1313 = vmatprep.subr.mxu0 0.0
    %1314 = vmatpush1.msra.mxu0 0.0
    %1315 = vmatprep.subr.mxu0 0.0
    %1316 = vmatpush1.msra.mxu0 0.0
    %1317 = vmatprep.subr.mxu0 0.0
    %1318 = vmatpush1.msra.mxu0 0.0
    %1319 = vmatprep.subr.mxu0 0.0
    %1320 = vmatpush1.msra.mxu0 0.0
    %1321 = vmatprep.subr.mxu0 0.0
    %1322 = vmatpush1.msra.mxu0 0.0
    %1323 = vmatprep.subr.mxu0 0.0
    %1324 = vmatpush1.msra.mxu0 0.0
    %1325 = vmatprep.subr.mxu0 %v1234
    %1326 = vmatpush1.msra.mxu0 %v1233
    %1327 = vmatprep.subr.mxu0 %v1230
    %1328 = vmatpush1.msra.mxu0 %v1229
    %1329 = vmatprep.subr.mxu0 %v1226
    %1330 = vmatpush1.msra.mxu0 %v1225
    %1331 = vmatprep.subr.mxu0 %v1222
    %1332 = vmatpush1.msra.mxu0 %v1221
    %1333 = vmatprep.subr.mxu0 %v1218
    %1334 = vmatpush1.msra.mxu0 %v1217
    %1335 = vmatprep.subr.mxu0 %v1214
    %1336 = vmatpush1.msra.mxu0 %v1213
    %1337 = vmatprep.subr.mxu0 %v1210
    %1338 = vmatpush1.msra.mxu0 %v1209
    %1339 = vmatprep.subr.mxu0 %v1206
    %1340 = vmatpush1.msra.mxu0 %v1205
    %1341 = vmatprep.subr.mxu0 0.0
    %1342 = vmatpush2.msra.mxu0 0.0
    %1343 = vmatprep.subr.mxu0 0.0
    %1344 = vmatpush2.msra.mxu0 0.0
    %1345 = vmatprep.subr.mxu0 0.0
    %1346 = vmatpush2.msra.mxu0 0.0
    %1347 = vmatprep.subr.mxu0 0.0
    %1348 = vmatpush2.msra.mxu0 0.0
    %1349 = vmatprep.subr.mxu0 0.0
    %1350 = vmatpush2.msra.mxu0 0.0
    %1351 = vmatprep.subr.mxu0 0.0
    %1352 = vmatpush2.msra.mxu0 0.0
    %1353 = vmatprep.subr.mxu0 0.0
    %1354 = vmatpush2.msra.mxu0 0.0
    %1355 = vmatprep.subr.mxu0 0.0
    %1356 = vmatpush2.msra.mxu0 0.0
    %1357 = vmatprep.subr.mxu0 0.0
    %1358 = vmatpush2.msra.mxu0 0.0
    %1359 = vmatprep.subr.mxu0 0.0
    %1360 = vmatpush2.msra.mxu0 0.0
    %1361 = vmatprep.subr.mxu0 0.0
    %1362 = vmatpush2.msra.mxu0 0.0
    %1363 = vmatprep.subr.mxu0 0.0
    %1364 = vmatpush2.msra.mxu0 0.0
    %1365 = vmatprep.subr.mxu0 0.0
    %1366 = vmatpush2.msra.mxu0 0.0
    %1367 = vmatprep.subr.mxu0 0.0
    %1368 = vmatpush2.msra.mxu0 0.0
    %1369 = vmatprep.subr.mxu0 0.0
    %1370 = vmatpush2.msra.mxu0 0.0
    %1371 = vmatprep.subr.mxu0 0.0
    %1372 = vmatpush2.msra.mxu0 0.0
    %1373 = vmatprep.mubr.f32.mxu0 0.0
    %1374 = vmatmul.mubr.f32.gmra.mxu0 %v1236
    %v1375 = vpop.f32.mrf.mxu0
    %v1376 = vadd.f32 0.0, %v1375
    %v1377 = vpop.f32.mrf.mxu0
    %v1378 = vadd.f32 0.0, %v1377
    %1379 = vdwg.mxu0
    %v1380 = vxor.u32 %v1376, 2147483648
    %v1381 = vxor.u32 %v1378, 2147483648
    %v1382 = vmul.f32 %v1380, 1.442695
    %v1383 = vpow.pop %v1382
    %v1384 = vmul.f32 %v1381, 1.442695
    %v1385 = vpow.pop %v1384
    %v1386 = vadd.f32 %v1383, 1.0
    %v1387 = vadd.f32 %v1385, 1.0
    %v1388 = vrcp.pop %v1386
    %v1389 = vmul.f32 1.0, %v1388
    %v1390 = vrcp.pop %v1387
    %v1391 = vmul.f32 1.0, %v1390
    %v1392 = vmul.f32 %v1376, %v1389
    %v1393 = vmul.f32 %v1378, %v1391
    %v1394 = vmul.f32 %v1305, %v1392
    %v1395 = vmul.f32 %v1307, %v1393
    %v1396 = vld [vmem:[%s12] sm:$0xff]
    %v1397 = vld [vmem:[%s12 + $0x8] sm:$0xff]
    %v1398 = vld [vmem:[%s12 + $0x10] sm:$0xff]
    %v1399 = vld [vmem:[%s12 + $0x18] sm:$0xff]
    %v1400 = vld [vmem:[%s12 + $0x20] sm:$0xff]
    %v1401 = vld [vmem:[%s12 + $0x28] sm:$0xff]
    %v1402 = vld [vmem:[%s12 + $0x30] sm:$0xff]
    %v1403 = vld [vmem:[%s12 + $0x38] sm:$0xff]
    %v1404 = vld [vmem:[%s12 + $0x40] sm:$0xff]
    %v1405 = vld [vmem:[%s12 + $0x48] sm:$0xff]
    %v1406 = vld [vmem:[%s12 + $0x50] sm:$0xff]
    %v1407 = vld [vmem:[%s12 + $0x58] sm:$0xff]
    %v1408 = vld [vmem:[%s12 + $0x60] sm:$0xff]
    %v1409 = vld [vmem:[%s12 + $0x68] sm:$0xff]
    %v1410 = vld [vmem:[%s12 + $0x70] sm:$0xff]
    %v1411 = vld [vmem:[%s12 + $0x78] sm:$0xff]
    %v1412 = vld [vmem:[%s12 + $0x80] sm:$0xff]
    %v1413 = vld [vmem:[%s12 + $0x88] sm:$0xff]
    %v1414 = vld [vmem:[%s12 + $0x90] sm:$0xff]
    %v1415 = vld [vmem:[%s12 + $0x98] sm:$0xff]
    %v1416 = vld [vmem:[%s12 + $0xa0] sm:$0xff]
    %v1417 = vld [vmem:[%s12 + $0xa8] sm:$0xff]
    %v1418 = vld [vmem:[%s12 + $0xb0] sm:$0xff]
    %v1419 = vld [vmem:[%s12 + $0xb8] sm:$0xff]
    %v1420 = vld [vmem:[%s12 + $0xc0] sm:$0xff]
    %v1421 = vld [vmem:[%s12 + $0xc8] sm:$0xff]
    %v1422 = vld [vmem:[%s12 + $0xd0] sm:$0xff]
    %v1423 = vld [vmem:[%s12 + $0xd8] sm:$0xff]
    %v1424 = vld [vmem:[%s12 + $0xe0] sm:$0xff]
    %v1425 = vld [vmem:[%s12 + $0xe8] sm:$0xff]
    %v1426 = vld [vmem:[%s12 + $0xf0] sm:$0xff]
    %v1427 = vld [vmem:[%s12 + $0xf8] sm:$0xff]
    %1428 = vmatprep.subr.mxu0 0.0
    %1429 = vmatpush1.msra.mxu0 %v1411
    %1430 = vmatprep.subr.mxu0 0.0
    %1431 = vmatpush1.msra.mxu0 %v1410
    %1432 = vmatprep.subr.mxu0 0.0
    %1433 = vmatpush1.msra.mxu0 %v1409
    %1434 = vmatprep.subr.mxu0 0.0
    %1435 = vmatpush1.msra.mxu0 %v1408
    %1436 = vmatprep.subr.mxu0 0.0
    %1437 = vmatpush1.msra.mxu0 %v1407
    %1438 = vmatprep.subr.mxu0 0.0
    %1439 = vmatpush1.msra.mxu0 %v1406
    %1440 = vmatprep.subr.mxu0 0.0
    %1441 = vmatpush1.msra.mxu0 %v1405
    %1442 = vmatprep.subr.mxu0 0.0
    %1443 = vmatpush1.msra.mxu0 %v1404
    %1444 = vmatprep.subr.mxu0 0.0
    %1445 = vmatpush1.msra.mxu0 %v1403
    %1446 = vmatprep.subr.mxu0 0.0
    %1447 = vmatpush1.msra.mxu0 %v1402
    %1448 = vmatprep.subr.mxu0 0.0
    %1449 = vmatpush1.msra.mxu0 %v1401
    %1450 = vmatprep.subr.mxu0 0.0
    %1451 = vmatpush1.msra.mxu0 %v1400
    %1452 = vmatprep.subr.mxu0 0.0
    %1453 = vmatpush1.msra.mxu0 %v1399
    %1454 = vmatprep.subr.mxu0 0.0
    %1455 = vmatpush1.msra.mxu0 %v1398
    %1456 = vmatprep.subr.mxu0 0.0
    %1457 = vmatpush1.msra.mxu0 %v1397
    %1458 = vmatprep.subr.mxu0 0.0
    %1459 = vmatpush1.msra.mxu0 %v1396
    %1460 = vmatprep.subr.mxu0 0.0
    %1461 = vmatpush2.msra.mxu0 %v1427
    %1462 = vmatprep.subr.mxu0 0.0
    %1463 = vmatpush2.msra.mxu0 %v1426
    %1464 = vmatprep.subr.mxu0 0.0
    %1465 = vmatpush2.msra.mxu0 %v1425
    %1466 = vmatprep.subr.mxu0 0.0
    %1467 = vmatpush2.msra.mxu0 %v1424
    %1468 = vmatprep.subr.mxu0 0.0
    %1469 = vmatpush2.msra.mxu0 %v1423
    %1470 = vmatprep.subr.mxu0 0.0
    %1471 = vmatpush2.msra.mxu0 %v1422
    %1472 = vmatprep.subr.mxu0 0.0
    %1473 = vmatpush2.msra.mxu0 %v1421
    %1474 = vmatprep.subr.mxu0 0.0
    %1475 = vmatpush2.msra.mxu0 %v1420
    %1476 = vmatprep.subr.mxu0 0.0
    %1477 = vmatpush2.msra.mxu0 %v1419
    %1478 = vmatprep.subr.mxu0 0.0
    %1479 = vmatpush2.msra.mxu0 %v1418
    %1480 = vmatprep.subr.mxu0 0.0
    %1481 = vmatpush2.msra.mxu0 %v1417
    %1482 = vmatprep.subr.mxu0 0.0
    %1483 = vmatpush2.msra.mxu0 %v1416
    %1484 = vmatprep.subr.mxu0 0.0
    %1485 = vmatpush2.msra.mxu0 %v1415
    %1486 = vmatprep.subr.mxu0 0.0
    %1487 = vmatpush2.msra.mxu0 %v1414
    %1488 = vmatprep.subr.mxu0 0.0
    %1489 = vmatpush2.msra.mxu0 %v1413
    %1490 = vmatprep.subr.mxu0 0.0
    %1491 = vmatpush2.msra.mxu0 %v1412
    %1492 = vmatprep.mubr.f32.mxu0 %v1395
    %1493 = vmatmul.mubr.f32.gmra.mxu0 %v1394
    %v1494 = vpop.f32.mrf.mxu0
    %v1495 = vadd.f32 0.0, %v1494
    %v1496 = vpop.f32.mrf.mxu0
    %1497 = vdwg.mxu0
    %v1499 = vsel %vm1164, %v1163, 0
    %1501 = vmatprep.subr.mxu0 0.0
    %1502 = vmatpush1.msra.mxu0 0.0
    %1503 = vmatprep.subr.mxu0 0.0
    %1504 = vmatpush1.msra.mxu0 0.0
    %1505 = vmatprep.subr.mxu0 0.0
    %1506 = vmatpush1.msra.mxu0 0.0
    %1507 = vmatprep.subr.mxu0 0.0
    %1508 = vmatpush1.msra.mxu0 0.0
    %1509 = vmatprep.subr.mxu0 0.0
    %1510 = vmatpush1.msra.mxu0 0.0
    %1511 = vmatprep.subr.mxu0 0.0
    %1512 = vmatpush1.msra.mxu0 0.0
    %1513 = vmatprep.subr.mxu0 0.0
    %1514 = vmatpush1.msra.mxu0 0.0
    %1515 = vmatprep.subr.mxu0 0.0
    %1516 = vmatpush1.msra.mxu0 0.0
    %1517 = vmatprep.subr.mxu0 0.0
    %1518 = vmatpush1.msra.mxu0 %v1202
    %1519 = vmatprep.subr.mxu0 0.0
    %1520 = vmatpush1.msra.mxu0 %v1201
    %1521 = vmatprep.subr.mxu0 0.0
    %1522 = vmatpush1.msra.mxu0 %v1200
    %1523 = vmatprep.subr.mxu0 0.0
    %1524 = vmatpush1.msra.mxu0 %v1199
    %1525 = vmatprep.subr.mxu0 0.0
    %1526 = vmatpush1.msra.mxu0 %v1198
    %1527 = vmatprep.subr.mxu0 0.0
    %1528 = vmatpush1.msra.mxu0 %v1197
    %1529 = vmatprep.subr.mxu0 0.0
    %1530 = vmatpush1.msra.mxu0 %v1196
    %1531 = vmatprep.subr.mxu0 0.0
    %1532 = vmatpush1.msra.mxu0 %v1195
    %1533 = vmatprep.subr.mxu0 0.0
    %1534 = vmatpush2.msra.mxu0 0.0
    %1535 = vmatprep.subr.mxu0 0.0
    %1536 = vmatpush2.msra.mxu0 0.0
    %1537 = vmatprep.subr.mxu0 0.0
    %1538 = vmatpush2.msra.mxu0 0.0
    %1539 = vmatprep.subr.mxu0 0.0
    %1540 = vmatpush2.msra.mxu0 0.0
    %1541 = vmatprep.subr.mxu0 0.0
    %1542 = vmatpush2.msra.mxu0 0.0
    %1543 = vmatprep.subr.mxu0 0.0
    %1544 = vmatpush2.msra.mxu0 0.0
    %1545 = vmatprep.subr.mxu0 0.0
    %1546 = vmatpush2.msra.mxu0 0.0
    %1547 = vmatprep.subr.mxu0 0.0
    %1548 = vmatpush2.msra.mxu0 0.0
    %1549 = vmatprep.subr.mxu0 0.0
    %1550 = vmatpush2.msra.mxu0 0.0
    %1551 = vmatprep.subr.mxu0 0.0
    %1552 = vmatpush2.msra.mxu0 0.0
    %1553 = vmatprep.subr.mxu0 0.0
    %1554 = vmatpush2.msra.mxu0 0.0
    %1555 = vmatprep.subr.mxu0 0.0
    %1556 = vmatpush2.msra.mxu0 0.0
    %1557 = vmatprep.subr.mxu0 0.0
    %1558 = vmatpush2.msra.mxu0 0.0
    %1559 = vmatprep.subr.mxu0 0.0
    %1560 = vmatpush2.msra.mxu0 0.0
    %1561 = vmatprep.subr.mxu0 0.0
    %1562 = vmatpush2.msra.mxu0 0.0
    %1563 = vmatprep.subr.mxu0 0.0
    %1564 = vmatpush2.msra.mxu0 0.0
    %1565 = vmatprep.mubr.f32.mxu0 0.0
    %1566 = vmatmul.mubr.f32.gmra.mxu0 %v1499
    %v1567 = vpop.f32.mrf.mxu0
    %v1568 = vadd.f32 %v1495, %v1567
    %v1569 = vpop.f32.mrf.mxu0
    %1570 = vdwg.mxu0
    %1571 = vst.msk [vmem:[#allocation2] sm:$0xff] %vm1164, %v1568
    // Predicated region
    $region54: #{_neural_encoder_layer.1} parent=1 // pred_check
      _
    $region55: #{_neural_encoder_layer.1} parent=1 // pred_check_branch
      %1573 = sbr.rel (0) target = $region57
    $region56: #{_neural_encoder_layer.1} parent=1 // pred_region
      %s1575 = ssub.s32 128, 128
      %1576 = vsyncadd [#allocation3], %s1575
      %s1578 = sshll.u32 [#allocation2], 4
      %s1579 = int_to_ptr.vmem [resolvable:$true] %s1578
      %1581 = dma.vmem_to_hbm [thread:$0]  %s1579, 128, %s13, [#allocation3]
    $region57: #{_neural_encoder_layer.1} parent=1 // pred_fallthru
      _
    // Predicated region
    $region58: #{_neural_encoder_layer.1} parent=1 // pred_check
      _
    $region59: #{_neural_encoder_layer.1} parent=1 // pred_check_branch
      %1583 = sbr.rel (0) target = $region61
    $region60: #{_neural_encoder_layer.1} parent=1 // pred_region
      %1584 = dma.done [#allocation3], 128
    $region61: #{_neural_encoder_layer.1} parent=1 // pred_fallthru
      _
    %1585 = vsyncpa [#allocation3], 1

</llo_original>
